<compile_context>
chip_gen: v6e
topology: v6e:2x2x1
jax: 0.10.0
libtpu: 0.0.40
codegen_flags: <defaults>
</compile_context>

<pallas_src>
import jax
import jax.numpy as jnp
from jax.experimental import pallas as pl
from jax.experimental.pallas import tpu as pltpu


# ---------------------------------------------------------------------------
# Fused Bottleneck kernel
# ---------------------------------------------------------------------------
def _bottleneck_kernel(xm_ref, xt_ref, xb_ref, w1_ref, w2_ref, w3_ref, o_ref):
    # xm_ref: (1, th, W, Cp)   main row tile of x          (compute dtype)
    # xt_ref: (1, 1,  W, Cp)   row just above the tile (clamped at image top)
    # xb_ref: (1, 1,  W, Cp)   row just below the tile (clamped at image bottom)
    # w1_ref: (Cp, Wd)         conv1 1x1 weights
    # w2_ref: (9, Wd, Wd)      conv2 3x3 weights, tap-major (kh*3+kw, Cin, Cout)
    # w3_ref: (Wd, Cp)         conv3 1x1 weights
    # o_ref : (1, th, W, Cp)   output tile (f32 / input dtype)
    _, th, W, Cp = xm_ref.shape
    Wd = w1_ref.shape[1]
    cdt = xm_ref.dtype

    i = pl.program_id(1)
    n_i = pl.num_programs(1)

    # Halo rows: zero outside the image (BlockSpec clamped the index; mask here).
    top_ok = jnp.where(i > 0, 1.0, 0.0).astype(cdt)
    bot_ok = jnp.where(i < n_i - 1, 1.0, 0.0).astype(cdt)
    x_main = xm_ref[0]                      # (th, W, Cp)
    x_top = xt_ref[0] * top_ok              # (1,  W, Cp)
    x_bot = xb_ref[0] * bot_ok              # (1,  W, Cp)

    # (th+2)-row window of x, halo included.
    x_win = jnp.concatenate([x_top, x_main, x_bot], axis=0)      # (th+2, W, Cp)

    # ---- conv1: 1x1 + ReLU (MXU, f32 accumulate, stays in VMEM) ----
    h1 = jnp.dot(x_win.reshape((th + 2) * W, Cp), w1_ref[...],
                 preferred_element_type=jnp.float32)
    h1 = jnp.maximum(h1, 0.0).astype(cdt).reshape(th + 2, W, Wd)

    # ---- conv2: 3x3 (pad=1) + ReLU ----
    # Build the two W-shifted copies once; per-tap slices below are contiguous
    # leading-dim (row) slices, so no per-tap relayout copies.
    zero_col = jnp.zeros((th + 2, 1, Wd), cdt)
    shift = [
        jnp.concatenate([zero_col, h1[:, :W - 1, :]], axis=1),   # kw=0: h1[., w-1]
        h1,                                                      # kw=1: h1[., w]
        jnp.concatenate([h1[:, 1:, :], zero_col], axis=1),       # kw=2: h1[., w+1]
    ]
    acc = jnp.zeros((th * W, Wd), jnp.float32)
    for kh in range(3):
        for kw in range(3):
            patch = shift[kw][kh:kh + th].reshape(th * W, Wd)
            acc = acc + jnp.dot(patch, w2_ref[kh * 3 + kw],
                                preferred_element_type=jnp.float32)
    h2 = jnp.maximum(acc, 0.0).astype(cdt)                       # (th*W, Wd)

    # ---- conv3: 1x1 + skip + ReLU (skip-add / ReLU in f32) ----
    y = jnp.dot(h2, w3_ref[...], preferred_element_type=jnp.float32)
    y = y + x_main.reshape(th * W, Cp).astype(jnp.float32)
    o_ref[...] = jnp.maximum(y, 0.0).reshape(1, th, W, Cp).astype(o_ref.dtype)


# ---------------------------------------------------------------------------
# Parameter glue: ScaledStdConv2d weight standardization (plain JAX prep)
# ---------------------------------------------------------------------------
def scaled_std_weight(w, gain, gamma=1.0, eps=1e-5):
    # nfnets-pytorch ScaledStdConv2d.get_weight(): torch.std is unbiased (ddof=1)
    # and eps is added to std (note: timm's batch_norm variant uses sqrt(var+eps)).
    fan_in = w.shape[1] * w.shape[2] * w.shape[3]
    mean = jnp.mean(w, axis=(1, 2, 3), keepdims=True)
    std = jnp.sqrt(jnp.var(w, axis=(1, 2, 3), keepdims=True, ddof=1))
    scale = gamma * fan_in ** -0.5
    return scale * (w - mean) / (std + eps) * gain.reshape(-1, 1, 1, 1)


def _round_up(x, m):
    return (x + m - 1) // m * m


# ---------------------------------------------------------------------------
# Bottleneck forward (NCHW in / NCHW out, like the PyTorch module)
# ---------------------------------------------------------------------------
def bottleneck_forward(x_nchw, params, *, row_tile=8, compute_dtype=jnp.bfloat16):
    N, Cin, H, W = x_nchw.shape

    w1 = scaled_std_weight(params["w1"], params["g1"])   # (width, Cin, 1, 1)
    w2 = scaled_std_weight(params["w2"], params["g2"])   # (width, width, 3, 3)
    w3 = scaled_std_weight(params["w3"], params["g3"])   # (Cout, width, 1, 1)
    width, Cout = w1.shape[0], w3.shape[0]
    assert Cin == Cout, "downsample=None requires inplanes == planes*expansion"

    # Lane-dense channel padding (multiples of 128). No-op for real NFNet widths.
    Cp = _round_up(Cin, 128)
    Wd = _round_up(width, 128)

    w1m = jnp.zeros((Cp, Wd), jnp.float32).at[:Cin, :width].set(
        jnp.transpose(w1[:, :, 0, 0], (1, 0)))
    w2m = jnp.zeros((9, Wd, Wd), jnp.float32).at[:, :width, :width].set(
        jnp.transpose(w2, (2, 3, 1, 0)).reshape(9, width, width))
    w3m = jnp.zeros((Wd, Cp), jnp.float32).at[:width, :Cout].set(
        jnp.transpose(w3[:, :, 0, 0], (1, 0)))
    w1m = w1m.astype(compute_dtype)
    w2m = w2m.astype(compute_dtype)
    w3m = w3m.astype(compute_dtype)

    # NCHW -> NHWC (kernel works NHWC; a real pipeline would stay NHWC end-to-end).
    x = jnp.transpose(x_nchw, (0, 2, 3, 1))
    if Cp != Cin:
        x = jnp.pad(x, ((0, 0), (0, 0), (0, 0), (0, Cp - Cin)))
    x = x.astype(compute_dtype)

    th = row_tile if (H >= row_tile and H % row_tile == 0) else H
    n_rows = H // th

    out = pl.pallas_call(
        _bottleneck_kernel,
        out_shape=jax.ShapeDtypeStruct((N, H, W, Cp), x_nchw.dtype),
        grid=(N, n_rows),
        in_specs=[
            # main row tile
            pl.BlockSpec((1, th, W, Cp), lambda n, i: (n, i, 0, 0)),
            # top halo row (block size 1 along H => block index == row index)
            pl.BlockSpec((1, 1, W, Cp),
                         lambda n, i: (n, jnp.maximum(i * th - 1, 0), 0, 0)),
            # bottom halo row
            pl.BlockSpec((1, 1, W, Cp),
                         lambda n, i: (n, jnp.minimum(i * th + th, H - 1), 0, 0)),
            # weights (resident, constant index maps)
            pl.BlockSpec((Cp, Wd), lambda n, i: (0, 0)),
            pl.BlockSpec((9, Wd, Wd), lambda n, i: (0, 0, 0)),
            pl.BlockSpec((Wd, Cp), lambda n, i: (0, 0)),
        ],
        out_specs=pl.BlockSpec((1, th, W, Cp), lambda n, i: (n, i, 0, 0)),
        compiler_params=pltpu.CompilerParams(
            dimension_semantics=("parallel", "parallel"),
            vmem_limit_bytes=32 * 1024 * 1024,
        ),
    )(x, x, x, w1m, w2m, w3m)

    out = out[..., :Cout]                        # drop channel padding
    return jnp.transpose(out, (0, 3, 1, 2))      # NHWC -> NCHW


# ---------------------------------------------------------------------------
# Pure-JAX reference (for correctness check)
# ---------------------------------------------------------------------------
def bottleneck_reference(x, params):
    w1 = scaled_std_weight(params["w1"], params["g1"])
    w2 = scaled_std_weight(params["w2"], params["g2"])
    w3 = scaled_std_weight(params["w3"], params["g3"])
    dn = ("NCHW", "OIHW", "NCHW")
    h = jax.nn.relu(jax.lax.conv_general_dilated(x, w1, (1, 1), "VALID",
                                                 dimension_numbers=dn))
    h = jax.nn.relu(jax.lax.conv_general_dilated(h, w2, (1, 1),
                                                 ((1, 1), (1, 1)),
                                                 dimension_numbers=dn))
    h = jax.lax.conv_general_dilated(h, w3, (1, 1), "VALID",
                                     dimension_numbers=dn)
    return jax.nn.relu(h + x)


if __name__ == "__main__":
    key = jax.random.PRNGKey(0)
    k1, k2, k3, kx = jax.random.split(key, 4)

    inplanes, planes, expansion = 16, 4, 4
    width = planes            # groups=1, base_width=64 -> width = planes
    N, H, W = 2, 16, 16

    params = {
        "w1": 0.1 * jax.random.normal(k1, (width, inplanes, 1, 1), jnp.float32),
        "g1": jnp.ones((width,), jnp.float32),
        "w2": 0.1 * jax.random.normal(k2, (width, width, 3, 3), jnp.float32),
        "g2": jnp.ones((width,), jnp.float32),
        "w3": 0.1 * jax.random.normal(k3, (planes * expansion, width, 1, 1), jnp.float32),
        "g3": jnp.ones((planes * expansion,), jnp.float32),
    }
    x = jax.random.normal(kx, (N, inplanes, H, W), jnp.float32)

    ref = bottleneck_reference(x, params)

    # f32 compute path (structural check)
    out_f32 = bottleneck_forward(x, params, compute_dtype=jnp.float32)
    jax.block_until_ready(out_f32)
    assert out_f32.shape == (N, planes * expansion, H, W)
    assert jnp.allclose(out_f32, ref, atol=5e-2, rtol=5e-2)

    # bf16-on-MXU / f32-accumulate path (the perf-tuned configuration)
    out_bf16 = bottleneck_forward(x, params, compute_dtype=jnp.bfloat16)
    jax.block_until_ready(out_bf16)
    assert out_bf16.shape == (N, planes * expansion, H, W)
    assert jnp.allclose(out_bf16, ref, atol=1e-1, rtol=1e-1)

    print("KERNEL_OK")
</pallas_src>

<mosaic_0001>
module attributes {stable_mosaic.version = 11 : i64} {
  func.func @_bottleneck_kernel(%arg0: i32, %arg1: i32, %arg2: memref<1x8x16x128xf32, #tpu.memory_space<vmem>>, %arg3: memref<1x1x16x128xf32, #tpu.memory_space<vmem>>, %arg4: memref<1x1x16x128xf32, #tpu.memory_space<vmem>>, %arg5: memref<128x128xf32, #tpu.memory_space<vmem>>, %arg6: memref<9x128x128xf32, #tpu.memory_space<vmem>>, %arg7: memref<128x128xf32, #tpu.memory_space<vmem>>, %arg8: memref<1x8x16x128xf32, #tpu.memory_space<vmem>>) attributes {dimension_semantics = [#tpu.dimension_semantics<parallel>, #tpu.dimension_semantics<parallel>], iteration_bounds = array<i64: 2, 2>, scalar_prefetch = 0 : i64, scratch_operands = 0 : i64, tpu.core_type = #tpu.core_type<tc>, window_params = [{transform_indices = @transform_0, window_bounds = array<i64: 1, 8, 16, 128>}, {transform_indices = @transform_1, window_bounds = array<i64: 1, 1, 16, 128>}, {transform_indices = @transform_2, window_bounds = array<i64: 1, 1, 16, 128>}, {pipeline_mode = #tpu.pipeline_mode<synchronous>, transform_indices = @transform_3, window_bounds = array<i64: 128, 128>}, {pipeline_mode = #tpu.pipeline_mode<synchronous>, transform_indices = @transform_4, window_bounds = array<i64: 9, 128, 128>}, {pipeline_mode = #tpu.pipeline_mode<synchronous>, transform_indices = @transform_5, window_bounds = array<i64: 128, 128>}, {transform_indices = @transform_6, window_bounds = array<i64: 1, 8, 16, 128>}]} {
    %c0_i32 = arith.constant 0 : i32
    %0 = arith.cmpi sgt, %arg1, %c0_i32 : i32
    %cst = arith.constant 1.000000e+00 : f32
    %cst_0 = arith.constant 0.000000e+00 : f32
    %1 = arith.select %0, %cst, %cst_0 : f32
    %c1_i32 = arith.constant 1 : i32
    %2 = arith.cmpi slt, %arg1, %c1_i32 : i32
    %cst_1 = arith.constant 1.000000e+00 : f32
    %cst_2 = arith.constant 0.000000e+00 : f32
    %3 = arith.select %2, %cst_1, %cst_2 : f32
    %c0 = arith.constant 0 : index
    %c0_3 = arith.constant 0 : index
    %c0_4 = arith.constant 0 : index
    %c0_5 = arith.constant 0 : index
    %4 = vector.load %arg2[%c0, %c0_3, %c0_4, %c0_5] : memref<1x8x16x128xf32, #tpu.memory_space<vmem>>, vector<1x8x16x128xf32>
    %5 = vector.shape_cast %4 : vector<1x8x16x128xf32> to vector<8x16x128xf32>
    %c0_6 = arith.constant 0 : index
    %c0_7 = arith.constant 0 : index
    %c0_8 = arith.constant 0 : index
    %c0_9 = arith.constant 0 : index
    %6 = vector.load %arg3[%c0_6, %c0_7, %c0_8, %c0_9] : memref<1x1x16x128xf32, #tpu.memory_space<vmem>>, vector<1x1x16x128xf32>
    %7 = vector.shape_cast %6 : vector<1x1x16x128xf32> to vector<1x16x128xf32>
    %8 = vector.broadcast %1 : f32 to vector<1x16x128xf32>
    %9 = arith.mulf %7, %8 : vector<1x16x128xf32>
    %c0_10 = arith.constant 0 : index
    %c0_11 = arith.constant 0 : index
    %c0_12 = arith.constant 0 : index
    %c0_13 = arith.constant 0 : index
    %10 = vector.load %arg4[%c0_10, %c0_11, %c0_12, %c0_13] : memref<1x1x16x128xf32, #tpu.memory_space<vmem>>, vector<1x1x16x128xf32>
    %11 = vector.shape_cast %10 : vector<1x1x16x128xf32> to vector<1x16x128xf32>
    %12 = vector.broadcast %3 : f32 to vector<1x16x128xf32>
    %13 = arith.mulf %11, %12 : vector<1x16x128xf32>
    %14 = tpu.concatenate %9, %5, %13 in 0 : vector<1x16x128xf32>, vector<8x16x128xf32>, vector<1x16x128xf32> -> vector<10x16x128xf32>
    %15 = vector.shape_cast %14 : vector<10x16x128xf32> to vector<160x128xf32>
    %c0_14 = arith.constant 0 : index
    %c0_15 = arith.constant 0 : index
    %16 = vector.load %arg5[%c0_14, %c0_15] : memref<128x128xf32, #tpu.memory_space<vmem>>, vector<128x128xf32>
    %cst_16 = arith.constant dense<0.000000e+00> : vector<160x128xf32>
    %17 = tpu.matmul %15, %16, %cst_16 {dimension_numbers = #tpu.dot_dimension_numbers<[1], [0], [0], [1], [0, 0, 1, 1], [], []>} : vector<160x128xf32>, vector<128x128xf32>, vector<160x128xf32> -> vector<160x128xf32>
    %cst_17 = arith.constant 0.000000e+00 : f32
    %18 = vector.broadcast %cst_17 : f32 to vector<160x128xf32>
    %19 = arith.maximumf %17, %18 : vector<160x128xf32>
    %20 = vector.shape_cast %19 : vector<160x128xf32> to vector<10x16x128xf32>
    %cst_18 = arith.constant 0.000000e+00 : f32
    %21 = vector.broadcast %cst_18 : f32 to vector<10x1x128xf32>
    %22 = vector.extract_strided_slice %20 {offsets = [0, 0, 0], sizes = [10, 15, 128], strides = [1, 1, 1]} : vector<10x16x128xf32> to vector<10x15x128xf32>
    %23 = tpu.concatenate %21, %22 in 1 : vector<10x1x128xf32>, vector<10x15x128xf32> -> vector<10x16x128xf32>
    %24 = vector.extract_strided_slice %20 {offsets = [0, 1, 0], sizes = [10, 15, 128], strides = [1, 1, 1]} : vector<10x16x128xf32> to vector<10x15x128xf32>
    %25 = tpu.concatenate %24, %21 in 1 : vector<10x15x128xf32>, vector<10x1x128xf32> -> vector<10x16x128xf32>
    %cst_19 = arith.constant 0.000000e+00 : f32
    %26 = vector.broadcast %cst_19 : f32 to vector<128x128xf32>
    %27 = vector.extract_strided_slice %23 {offsets = [0, 0, 0], sizes = [8, 16, 128], strides = [1, 1, 1]} : vector<10x16x128xf32> to vector<8x16x128xf32>
    %28 = vector.shape_cast %27 : vector<8x16x128xf32> to vector<128x128xf32>
    %c0_20 = arith.constant 0 : index
    %c0_21 = arith.constant 0 : index
    %c0_22 = arith.constant 0 : index
    %29 = vector.load %arg6[%c0_20, %c0_21, %c0_22] : memref<9x128x128xf32, #tpu.memory_space<vmem>>, vector<1x128x128xf32>
    %30 = vector.shape_cast %29 : vector<1x128x128xf32> to vector<128x128xf32>
    %cst_23 = arith.constant dense<0.000000e+00> : vector<128x128xf32>
    %31 = tpu.matmul %28, %30, %cst_23 {dimension_numbers = #tpu.dot_dimension_numbers<[1], [0], [0], [1], [0, 0, 1, 1], [], []>} : vector<128x128xf32>, vector<128x128xf32>, vector<128x128xf32> -> vector<128x128xf32>
    %32 = arith.addf %26, %31 : vector<128x128xf32>
    %33 = vector.extract_strided_slice %20 {offsets = [0, 0, 0], sizes = [8, 16, 128], strides = [1, 1, 1]} : vector<10x16x128xf32> to vector<8x16x128xf32>
    %34 = vector.shape_cast %33 : vector<8x16x128xf32> to vector<128x128xf32>
    %c1 = arith.constant 1 : index
    %c0_24 = arith.constant 0 : index
    %c0_25 = arith.constant 0 : index
    %35 = vector.load %arg6[%c1, %c0_24, %c0_25] : memref<9x128x128xf32, #tpu.memory_space<vmem>>, vector<1x128x128xf32>
    %36 = vector.shape_cast %35 : vector<1x128x128xf32> to vector<128x128xf32>
    %cst_26 = arith.constant dense<0.000000e+00> : vector<128x128xf32>
    %37 = tpu.matmul %34, %36, %cst_26 {dimension_numbers = #tpu.dot_dimension_numbers<[1], [0], [0], [1], [0, 0, 1, 1], [], []>} : vector<128x128xf32>, vector<128x128xf32>, vector<128x128xf32> -> vector<128x128xf32>
    %38 = arith.addf %32, %37 : vector<128x128xf32>
    %39 = vector.extract_strided_slice %25 {offsets = [0, 0, 0], sizes = [8, 16, 128], strides = [1, 1, 1]} : vector<10x16x128xf32> to vector<8x16x128xf32>
    %40 = vector.shape_cast %39 : vector<8x16x128xf32> to vector<128x128xf32>
    %c2 = arith.constant 2 : index
    %c0_27 = arith.constant 0 : index
    %c0_28 = arith.constant 0 : index
    %41 = vector.load %arg6[%c2, %c0_27, %c0_28] : memref<9x128x128xf32, #tpu.memory_space<vmem>>, vector<1x128x128xf32>
    %42 = vector.shape_cast %41 : vector<1x128x128xf32> to vector<128x128xf32>
    %cst_29 = arith.constant dense<0.000000e+00> : vector<128x128xf32>
    %43 = tpu.matmul %40, %42, %cst_29 {dimension_numbers = #tpu.dot_dimension_numbers<[1], [0], [0], [1], [0, 0, 1, 1], [], []>} : vector<128x128xf32>, vector<128x128xf32>, vector<128x128xf32> -> vector<128x128xf32>
    %44 = arith.addf %38, %43 : vector<128x128xf32>
    %45 = vector.extract_strided_slice %23 {offsets = [1, 0, 0], sizes = [8, 16, 128], strides = [1, 1, 1]} : vector<10x16x128xf32> to vector<8x16x128xf32>
    %46 = vector.shape_cast %45 : vector<8x16x128xf32> to vector<128x128xf32>
    %c3 = arith.constant 3 : index
    %c0_30 = arith.constant 0 : index
    %c0_31 = arith.constant 0 : index
    %47 = vector.load %arg6[%c3, %c0_30, %c0_31] : memref<9x128x128xf32, #tpu.memory_space<vmem>>, vector<1x128x128xf32>
    %48 = vector.shape_cast %47 : vector<1x128x128xf32> to vector<128x128xf32>
    %cst_32 = arith.constant dense<0.000000e+00> : vector<128x128xf32>
    %49 = tpu.matmul %46, %48, %cst_32 {dimension_numbers = #tpu.dot_dimension_numbers<[1], [0], [0], [1], [0, 0, 1, 1], [], []>} : vector<128x128xf32>, vector<128x128xf32>, vector<128x128xf32> -> vector<128x128xf32>
    %50 = arith.addf %44, %49 : vector<128x128xf32>
    %51 = vector.extract_strided_slice %20 {offsets = [1, 0, 0], sizes = [8, 16, 128], strides = [1, 1, 1]} : vector<10x16x128xf32> to vector<8x16x128xf32>
    %52 = vector.shape_cast %51 : vector<8x16x128xf32> to vector<128x128xf32>
    %c4 = arith.constant 4 : index
    %c0_33 = arith.constant 0 : index
    %c0_34 = arith.constant 0 : index
    %53 = vector.load %arg6[%c4, %c0_33, %c0_34] : memref<9x128x128xf32, #tpu.memory_space<vmem>>, vector<1x128x128xf32>
    %54 = vector.shape_cast %53 : vector<1x128x128xf32> to vector<128x128xf32>
    %cst_35 = arith.constant dense<0.000000e+00> : vector<128x128xf32>
    %55 = tpu.matmul %52, %54, %cst_35 {dimension_numbers = #tpu.dot_dimension_numbers<[1], [0], [0], [1], [0, 0, 1, 1], [], []>} : vector<128x128xf32>, vector<128x128xf32>, vector<128x128xf32> -> vector<128x128xf32>
    %56 = arith.addf %50, %55 : vector<128x128xf32>
    %57 = vector.extract_strided_slice %25 {offsets = [1, 0, 0], sizes = [8, 16, 128], strides = [1, 1, 1]} : vector<10x16x128xf32> to vector<8x16x128xf32>
    %58 = vector.shape_cast %57 : vector<8x16x128xf32> to vector<128x128xf32>
    %c5 = arith.constant 5 : index
    %c0_36 = arith.constant 0 : index
    %c0_37 = arith.constant 0 : index
    %59 = vector.load %arg6[%c5, %c0_36, %c0_37] : memref<9x128x128xf32, #tpu.memory_space<vmem>>, vector<1x128x128xf32>
    %60 = vector.shape_cast %59 : vector<1x128x128xf32> to vector<128x128xf32>
    %cst_38 = arith.constant dense<0.000000e+00> : vector<128x128xf32>
    %61 = tpu.matmul %58, %60, %cst_38 {dimension_numbers = #tpu.dot_dimension_numbers<[1], [0], [0], [1], [0, 0, 1, 1], [], []>} : vector<128x128xf32>, vector<128x128xf32>, vector<128x128xf32> -> vector<128x128xf32>
    %62 = arith.addf %56, %61 : vector<128x128xf32>
    %63 = vector.extract_strided_slice %23 {offsets = [2, 0, 0], sizes = [8, 16, 128], strides = [1, 1, 1]} : vector<10x16x128xf32> to vector<8x16x128xf32>
    %64 = vector.shape_cast %63 : vector<8x16x128xf32> to vector<128x128xf32>
    %c6 = arith.constant 6 : index
    %c0_39 = arith.constant 0 : index
    %c0_40 = arith.constant 0 : index
    %65 = vector.load %arg6[%c6, %c0_39, %c0_40] : memref<9x128x128xf32, #tpu.memory_space<vmem>>, vector<1x128x128xf32>
    %66 = vector.shape_cast %65 : vector<1x128x128xf32> to vector<128x128xf32>
    %cst_41 = arith.constant dense<0.000000e+00> : vector<128x128xf32>
    %67 = tpu.matmul %64, %66, %cst_41 {dimension_numbers = #tpu.dot_dimension_numbers<[1], [0], [0], [1], [0, 0, 1, 1], [], []>} : vector<128x128xf32>, vector<128x128xf32>, vector<128x128xf32> -> vector<128x128xf32>
    %68 = arith.addf %62, %67 : vector<128x128xf32>
    %69 = vector.extract_strided_slice %20 {offsets = [2, 0, 0], sizes = [8, 16, 128], strides = [1, 1, 1]} : vector<10x16x128xf32> to vector<8x16x128xf32>
    %70 = vector.shape_cast %69 : vector<8x16x128xf32> to vector<128x128xf32>
    %c7 = arith.constant 7 : index
    %c0_42 = arith.constant 0 : index
    %c0_43 = arith.constant 0 : index
    %71 = vector.load %arg6[%c7, %c0_42, %c0_43] : memref<9x128x128xf32, #tpu.memory_space<vmem>>, vector<1x128x128xf32>
    %72 = vector.shape_cast %71 : vector<1x128x128xf32> to vector<128x128xf32>
    %cst_44 = arith.constant dense<0.000000e+00> : vector<128x128xf32>
    %73 = tpu.matmul %70, %72, %cst_44 {dimension_numbers = #tpu.dot_dimension_numbers<[1], [0], [0], [1], [0, 0, 1, 1], [], []>} : vector<128x128xf32>, vector<128x128xf32>, vector<128x128xf32> -> vector<128x128xf32>
    %74 = arith.addf %68, %73 : vector<128x128xf32>
    %75 = vector.extract_strided_slice %25 {offsets = [2, 0, 0], sizes = [8, 16, 128], strides = [1, 1, 1]} : vector<10x16x128xf32> to vector<8x16x128xf32>
    %76 = vector.shape_cast %75 : vector<8x16x128xf32> to vector<128x128xf32>
    %c8 = arith.constant 8 : index
    %c0_45 = arith.constant 0 : index
    %c0_46 = arith.constant 0 : index
    %77 = vector.load %arg6[%c8, %c0_45, %c0_46] : memref<9x128x128xf32, #tpu.memory_space<vmem>>, vector<1x128x128xf32>
    %78 = vector.shape_cast %77 : vector<1x128x128xf32> to vector<128x128xf32>
    %cst_47 = arith.constant dense<0.000000e+00> : vector<128x128xf32>
    %79 = tpu.matmul %76, %78, %cst_47 {dimension_numbers = #tpu.dot_dimension_numbers<[1], [0], [0], [1], [0, 0, 1, 1], [], []>} : vector<128x128xf32>, vector<128x128xf32>, vector<128x128xf32> -> vector<128x128xf32>
    %80 = arith.addf %74, %79 : vector<128x128xf32>
    %cst_48 = arith.constant 0.000000e+00 : f32
    %81 = vector.broadcast %cst_48 : f32 to vector<128x128xf32>
    %82 = arith.maximumf %80, %81 : vector<128x128xf32>
    %c0_49 = arith.constant 0 : index
    %c0_50 = arith.constant 0 : index
    %83 = vector.load %arg7[%c0_49, %c0_50] : memref<128x128xf32, #tpu.memory_space<vmem>>, vector<128x128xf32>
    %cst_51 = arith.constant dense<0.000000e+00> : vector<128x128xf32>
    %84 = tpu.matmul %82, %83, %cst_51 {dimension_numbers = #tpu.dot_dimension_numbers<[1], [0], [0], [1], [0, 0, 1, 1], [], []>} : vector<128x128xf32>, vector<128x128xf32>, vector<128x128xf32> -> vector<128x128xf32>
    %85 = vector.shape_cast %5 : vector<8x16x128xf32> to vector<128x128xf32>
    %86 = arith.addf %84, %85 : vector<128x128xf32>
    %cst_52 = arith.constant 0.000000e+00 : f32
    %87 = vector.broadcast %cst_52 : f32 to vector<128x128xf32>
    %88 = arith.maximumf %86, %87 : vector<128x128xf32>
    %89 = vector.shape_cast %88 : vector<128x128xf32> to vector<1x8x16x128xf32>
    %c0_53 = arith.constant 0 : index
    %c0_54 = arith.constant 0 : index
    %c0_55 = arith.constant 0 : index
    %c0_56 = arith.constant 0 : index
    %90 = vector.load %arg8[%c0_53, %c0_54, %c0_55, %c0_56] : memref<1x8x16x128xf32, #tpu.memory_space<vmem>>, vector<1x8x16x128xf32>
    tpu.vector_store %arg8[%c0_53, %c0_54, %c0_55, %c0_56], %89 {strides = array<i32>} : memref<1x8x16x128xf32, #tpu.memory_space<vmem>>, vector<1x8x16x128xf32>,
    return
  }
  func.func @transform_0(%arg0: i32, %arg1: i32) -> (i32, i32, i32, i32) {
    %c0_i32 = arith.constant 0 : i32
    %c0_i32_0 = arith.constant 0 : i32
    %c0_i32_1 = arith.constant 0 : i32
    return %arg0, %arg1, %c0_i32, %c0_i32_0 : i32, i32, i32, i32
  }
  func.func @transform_1(%arg0: i32, %arg1: i32) -> (i32, i32, i32, i32) {
    %c8_i32 = arith.constant 8 : i32
    %0 = arith.muli %arg1, %c8_i32 : i32
    %c1_i32 = arith.constant 1 : i32
    %1 = arith.subi %0, %c1_i32 : i32
    %c0_i32 = arith.constant 0 : i32
    %2 = arith.maxsi %1, %c0_i32 : i32
    %c0_i32_0 = arith.constant 0 : i32
    %c0_i32_1 = arith.constant 0 : i32
    %c0_i32_2 = arith.constant 0 : i32
    return %arg0, %2, %c0_i32_0, %c0_i32_1 : i32, i32, i32, i32
  }
  func.func @transform_2(%arg0: i32, %arg1: i32) -> (i32, i32, i32, i32) {
    %c8_i32 = arith.constant 8 : i32
    %0 = arith.muli %arg1, %c8_i32 : i32
    %c8_i32_0 = arith.constant 8 : i32
    %1 = arith.addi %0, %c8_i32_0 : i32
    %c15_i32 = arith.constant 15 : i32
    %2 = arith.minsi %1, %c15_i32 : i32
    %c0_i32 = arith.constant 0 : i32
    %c0_i32_1 = arith.constant 0 : i32
    %c0_i32_2 = arith.constant 0 : i32
    return %arg0, %2, %c0_i32, %c0_i32_1 : i32, i32, i32, i32
  }
  func.func @transform_3(%arg0: i32, %arg1: i32) -> (i32, i32) {
    %c0_i32 = arith.constant 0 : i32
    %c0_i32_0 = arith.constant 0 : i32
    %c0_i32_1 = arith.constant 0 : i32
    return %c0_i32, %c0_i32_0 : i32, i32
  }
  func.func @transform_4(%arg0: i32, %arg1: i32) -> (i32, i32, i32) {
    %c0_i32 = arith.constant 0 : i32
    %c0_i32_0 = arith.constant 0 : i32
    %c0_i32_1 = arith.constant 0 : i32
    %c0_i32_2 = arith.constant 0 : i32
    return %c0_i32, %c0_i32_0, %c0_i32_1 : i32, i32, i32
  }
  func.func @transform_5(%arg0: i32, %arg1: i32) -> (i32, i32) {
    %c0_i32 = arith.constant 0 : i32
    %c0_i32_0 = arith.constant 0 : i32
    %c0_i32_1 = arith.constant 0 : i32
    return %c0_i32, %c0_i32_0 : i32, i32
  }
  func.func @transform_6(%arg0: i32, %arg1: i32) -> (i32, i32, i32, i32) {
    %c0_i32 = arith.constant 0 : i32
    %c0_i32_0 = arith.constant 0 : i32
    %c0_i32_1 = arith.constant 0 : i32
    return %arg0, %arg1, %c0_i32, %c0_i32_0 : i32, i32, i32, i32
  }
}

</mosaic_0001>

<llo_original>
// kernel: tpu_custom_call.1
$region0: #{tpu_custom_call.1}
  #allocation0 [shape = 'u32[]', space=smem, size = 0x4, offset = 0x4, fixed_abs, tag = 'smem constant byte address 0x4 - core index']
  #allocation1 [shape = 'u32[144,128]{1,0:T(1,128)}', space=vmem, size = 0x12000, scoped, tag = 'internal scratch']
  %s0 = inlined_call_operand.hbm [shape: f32[2,16,16,128], index: 0, kind: input, shape index: {}]
  %s1 = inlined_call_operand.hbm [shape: f32[2,16,16,128], index: 1, kind: input, shape index: {}]
  %s2 = inlined_call_operand.hbm [shape: f32[2,16,16,128], index: 2, kind: input, shape index: {}]
  %s3 = inlined_call_operand.hbm [shape: f32[128,128], index: 3, kind: input, shape index: {}]
  %s4 = inlined_call_operand.hbm [shape: f32[9,128,128], index: 4, kind: input, shape index: {}]
  %s5 = inlined_call_operand.hbm [shape: f32[128,128], index: 5, kind: input, shape index: {}]
  %s6 = inlined_call_operand.hbm [shape: f32[2,16,16,128], index: 6, kind: output, shape index: {}]
  %s7 = sld [smem:[#allocation0]]
  $region81: #{tpu_custom_call.1} parent=0
    _
  %s9 = ssub.s32 1, %s7
  %s10 = scalar_select 0, %s9, %s7
  $region1: #{tpu_custom_call.1} parent=0
    #allocation2 [shape = 'u8[131072]{0}', space=vmem, size = 0x20000, scoped, tag = 'input window, operand 0']
    #allocation3 [shape = 's32[2]{0}', space=sflag, size = 0x8, scoped, tag = 'scoped memory for tpu_custom_call.1']
    #allocation4 [shape = 's32[2]{0}', space=sflag, size = 0x8, scoped, tag = 'scoped memory for tpu_custom_call.1']
    #allocation5 [shape = 'u8[16384]{0}', space=vmem, size = 0x4000, scoped, tag = 'input window, operand 1']
    #allocation6 [shape = 's32[2]{0}', space=sflag, size = 0x8, scoped, tag = 'scoped memory for tpu_custom_call.1']
    #allocation7 [shape = 'u8[16384]{0}', space=vmem, size = 0x4000, scoped, tag = 'input window, operand 2']
    #allocation8 [shape = 'u8[65536]{0}', space=vmem, size = 0x10000, scoped, tag = 'input window, operand 3, single buffered']
    #allocation9 [shape = 's32[1]{0}', space=sflag, size = 0x4, scoped, tag = 'scoped memory for tpu_custom_call.1']
    #allocation10 [shape = 'u8[589824]{0}', space=vmem, size = 0x90000, scoped, tag = 'input window, operand 4, single buffered']
    #allocation11 [shape = 'u8[65536]{0}', space=vmem, size = 0x10000, scoped, tag = 'input window, operand 5, single buffered']
    #allocation12 [shape = 's32[1]{0}', space=sflag, size = 0x4, scoped, tag = 'scoped memory for tpu_custom_call.1']
    #allocation13 [shape = 'u8[131072]{0}', space=vmem, size = 0x20000, scoped, tag = 'output window, operand 0']
    %11 = vsyncpa [#allocation3], 0
    %s12 = scalar_lea.sflag [#allocation3], 1
    %13 = vsyncpa %s12, 0
    %14 = vsyncpa [#allocation6], 0
    %s15 = scalar_lea.sflag [#allocation6], 1
    %16 = vsyncpa %s15, 0
    %17 = vsyncpa [#allocation9], 0
    %18 = vsyncpa [#allocation12], 0
    %19 = vsyncpa [#allocation4], 0
    %s20 = scalar_lea.sflag [#allocation4], 1
    %21 = vsyncpa %s20, 0
    loop: start=0, step=1, limit=6
    $region2: #{tpu_custom_call.1} parent=1 // loop_pre_header
      _
    $region3: #{tpu_custom_call.1} parent=1 // loop_header
      %s23 = sphi 0, %s27
      %p24 = scmp.ge.s32.totalorder %s23, 6
      %s30 = sphi 0, %s42
      %s31 = sphi 0, %s38
      %s32 = sphi 0, %s30
      %s33 = sphi 0, %s31
      %s34 = sphi 0, %s32
      %s35 = sphi 0, %s33
      %s47 = sphi 0, %s49
      %s50 = sphi 0, %s47
      %s51 = sphi 0, %s50
      %s67 = sphi 0, %s51
      %s83 = sphi 0, %s85
      %s86 = sphi 0, %s83
      %s87 = sphi 0, %s86
      %s103 = sphi 0, %s87
      %s119 = sphi 0, %s121
      %s122 = sphi 0, %s119
      %s123 = sphi 0, %s122
      %s139 = sphi 0, %s123
      %s143 = sphi 0, %s143
      %s145 = sphi 0, %s143
      %s146 = sphi 0, %s145
      %s160 = sphi 0, %s146
      %s164 = sphi 0, %s164
      %s166 = sphi 0, %s164
      %s167 = sphi 0, %s166
      %s181 = sphi 0, %s167
      %s185 = sphi 0, %s185
      %s187 = sphi 0, %s185
      %s188 = sphi 0, %s187
      %s202 = sphi 0, %s188
      %s210 = sphi 0, %s212
      %s213 = sphi 0, %s210
      %s214 = sphi 0, %s213
      %s230 = sphi 0, %s214
    $region4: #{tpu_custom_call.1} parent=1 // loop_header_branch
      %26 = sbr.rel (%p24) target = $region8
    $region5: #{tpu_custom_call.1} parent=1 // loop_body
      %s28 = ssub.s32 %s23, 1
      %s29 = ssub.s32 %s23, 2
      %s36 = sadd.s32 1, %s31
      %p37 = scmp.ge.s32.totalorder %s36, 2
      %s38 = scalar_select %p37, 0, %s36
      %s39 = sadd.s32 1, %s30
      %s40 = scalar_select %p37, %s39, %s30
      %p41 = scmp.ge.s32.totalorder %s40, 2
      %s42 = scalar_select %p41, 0, %s40
      %s43 = ssub.s32 %s30, %s42
      %s44 = ssub.s32 %s31, %s38
      %s45 = sor.u32 %s43, %s44
      %p46 = scmp.eq.s32.totalorder %s45, 0
      %s48 = sadd.s32 %s47, 1
      %s49 = scalar_select %p46, %s47, %s48
      %p52 = pneg %p46
      %p53 = scmp.eq.s32.totalorder %s23, 3
      %p54 = por %p52, %p53
      %p55 = scmp.ne.s32.totalorder %s47, %s50
      %p56 = scmp.eq.s32.totalorder %s23, 0
      %p57 = por %p55, %p56
      %p58 = scmp.ne.s32.totalorder %s47, %s50
      %p59 = scmp.eq.s32.totalorder %s28, 3
      %p60 = por %p58, %p59
      %p61 = scmp.ne.s32.totalorder %s50, %s51
      %p62 = scmp.eq.s32.totalorder %s28, 0
      %p63 = por %p61, %p62
      %p64 = scmp.ne.s32.totalorder %s50, %s51
      %p65 = scmp.eq.s32.totalorder %s29, 3
      %p66 = por %p64, %p65
      %p68 = scmp.ne.s32.totalorder %s51, %s67
      %p69 = scmp.eq.s32.totalorder %s29, 0
      %p70 = por %p68, %p69
      %s71 = smul.u32 %s31, 8
      %s72 = ssub.s32 %s71, 1
      %p73 = scmp.gt.s32.totalorder %s72, 0
      %s74 = scalar_select %p73, %s72, 0
      %s75 = smul.u32 %s38, 8
      %s76 = ssub.s32 %s75, 1
      %p77 = scmp.gt.s32.totalorder %s76, 0
      %s78 = scalar_select %p77, %s76, 0
      %s79 = ssub.s32 %s30, %s42
      %s80 = ssub.s32 %s74, %s78
      %s81 = sor.u32 %s79, %s80
      %p82 = scmp.eq.s32.totalorder %s81, 0
      %s84 = sadd.s32 %s83, 1
      %s85 = scalar_select %p82, %s83, %s84
      %p88 = pneg %p82
      %p89 = scmp.eq.s32.totalorder %s23, 3
      %p90 = por %p88, %p89
      %p91 = scmp.ne.s32.totalorder %s83, %s86
      %p92 = scmp.eq.s32.totalorder %s23, 0
      %p93 = por %p91, %p92
      %p94 = scmp.ne.s32.totalorder %s83, %s86
      %p95 = scmp.eq.s32.totalorder %s28, 3
      %p96 = por %p94, %p95
      %p97 = scmp.ne.s32.totalorder %s86, %s87
      %p98 = scmp.eq.s32.totalorder %s28, 0
      %p99 = por %p97, %p98
      %p100 = scmp.ne.s32.totalorder %s86, %s87
      %p101 = scmp.eq.s32.totalorder %s29, 3
      %p102 = por %p100, %p101
      %p104 = scmp.ne.s32.totalorder %s87, %s103
      %p105 = scmp.eq.s32.totalorder %s29, 0
      %p106 = por %p104, %p105
      %s107 = smul.u32 %s31, 8
      %s108 = sadd.s32 %s107, 8
      %p109 = scmp.lt.s32.totalorder %s108, 15
      %s110 = scalar_select %p109, %s108, 15
      %s111 = smul.u32 %s38, 8
      %s112 = sadd.s32 %s111, 8
      %p113 = scmp.lt.s32.totalorder %s112, 15
      %s114 = scalar_select %p113, %s112, 15
      %s115 = ssub.s32 %s30, %s42
      %s116 = ssub.s32 %s110, %s114
      %s117 = sor.u32 %s115, %s116
      %p118 = scmp.eq.s32.totalorder %s117, 0
      %s120 = sadd.s32 %s119, 1
      %s121 = scalar_select %p118, %s119, %s120
      %p124 = pneg %p118
      %p125 = scmp.eq.s32.totalorder %s23, 3
      %p126 = por %p124, %p125
      %p127 = scmp.ne.s32.totalorder %s119, %s122
      %p128 = scmp.eq.s32.totalorder %s23, 0
      %p129 = por %p127, %p128
      %p130 = scmp.ne.s32.totalorder %s119, %s122
      %p131 = scmp.eq.s32.totalorder %s28, 3
      %p132 = por %p130, %p131
      %p133 = scmp.ne.s32.totalorder %s122, %s123
      %p134 = scmp.eq.s32.totalorder %s28, 0
      %p135 = por %p133, %p134
      %p136 = scmp.ne.s32.totalorder %s122, %s123
      %p137 = scmp.eq.s32.totalorder %s29, 3
      %p138 = por %p136, %p137
      %p140 = scmp.ne.s32.totalorder %s123, %s139
      %p141 = scmp.eq.s32.totalorder %s29, 0
      %p142 = por %p140, %p141
      %s144 = sadd.s32 %s143, 1
      %p147 = scmp.eq.s32.totalorder %s23, 3
      %p148 = scmp.ne.s32.totalorder %s143, %s145
      %p149 = scmp.eq.s32.totalorder %s23, 0
      %p150 = por %p148, %p149
      %p151 = scmp.ne.s32.totalorder %s143, %s145
      %p152 = scmp.eq.s32.totalorder %s28, 3
      %p153 = por %p151, %p152
      %p154 = scmp.ne.s32.totalorder %s145, %s146
      %p155 = scmp.eq.s32.totalorder %s28, 0
      %p156 = por %p154, %p155
      %p157 = scmp.ne.s32.totalorder %s145, %s146
      %p158 = scmp.eq.s32.totalorder %s29, 3
      %p159 = por %p157, %p158
      %p161 = scmp.ne.s32.totalorder %s146, %s160
      %p162 = scmp.eq.s32.totalorder %s29, 0
      %p163 = por %p161, %p162
      %s165 = sadd.s32 %s164, 1
      %p168 = scmp.eq.s32.totalorder %s23, 3
      %p169 = scmp.ne.s32.totalorder %s164, %s166
      %p170 = scmp.eq.s32.totalorder %s23, 0
      %p171 = por %p169, %p170
      %p172 = scmp.ne.s32.totalorder %s164, %s166
      %p173 = scmp.eq.s32.totalorder %s28, 3
      %p174 = por %p172, %p173
      %p175 = scmp.ne.s32.totalorder %s166, %s167
      %p176 = scmp.eq.s32.totalorder %s28, 0
      %p177 = por %p175, %p176
      %p178 = scmp.ne.s32.totalorder %s166, %s167
      %p179 = scmp.eq.s32.totalorder %s29, 3
      %p180 = por %p178, %p179
      %p182 = scmp.ne.s32.totalorder %s167, %s181
      %p183 = scmp.eq.s32.totalorder %s29, 0
      %p184 = por %p182, %p183
      %s186 = sadd.s32 %s185, 1
      %p189 = scmp.eq.s32.totalorder %s23, 3
      %p190 = scmp.ne.s32.totalorder %s185, %s187
      %p191 = scmp.eq.s32.totalorder %s23, 0
      %p192 = por %p190, %p191
      %p193 = scmp.ne.s32.totalorder %s185, %s187
      %p194 = scmp.eq.s32.totalorder %s28, 3
      %p195 = por %p193, %p194
      %p196 = scmp.ne.s32.totalorder %s187, %s188
      %p197 = scmp.eq.s32.totalorder %s28, 0
      %p198 = por %p196, %p197
      %p199 = scmp.ne.s32.totalorder %s187, %s188
      %p200 = scmp.eq.s32.totalorder %s29, 3
      %p201 = por %p199, %p200
      %p203 = scmp.ne.s32.totalorder %s188, %s202
      %p204 = scmp.eq.s32.totalorder %s29, 0
      %p205 = por %p203, %p204
      %s206 = ssub.s32 %s30, %s42
      %s207 = ssub.s32 %s31, %s38
      %s208 = sor.u32 %s206, %s207
      %p209 = scmp.eq.s32.totalorder %s208, 0
      %s211 = sadd.s32 %s210, 1
      %s212 = scalar_select %p209, %s210, %s211
      %p215 = pneg %p209
      %p216 = scmp.eq.s32.totalorder %s23, 3
      %p217 = por %p215, %p216
      %p218 = scmp.ne.s32.totalorder %s210, %s213
      %p219 = scmp.eq.s32.totalorder %s23, 0
      %p220 = por %p218, %p219
      %p221 = scmp.ne.s32.totalorder %s210, %s213
      %p222 = scmp.eq.s32.totalorder %s28, 3
      %p223 = por %p221, %p222
      %p224 = scmp.ne.s32.totalorder %s213, %s214
      %p225 = scmp.eq.s32.totalorder %s28, 0
      %p226 = por %p224, %p225
      %p227 = scmp.ne.s32.totalorder %s213, %s214
      %p228 = scmp.eq.s32.totalorder %s29, 3
      %p229 = por %p227, %p228
      %p231 = scmp.ne.s32.totalorder %s214, %s230
      %p232 = scmp.eq.s32.totalorder %s29, 0
      %p233 = por %p231, %p232
      %p234 = scmp.le.s32.totalorder 1, %s23
      %p235 = scmp.lt.s32.totalorder %s23, 5
      %p236 = pnand %p234, %p235
      %p237 = pneg %p236
      // Predicated region
      $region9: #{tpu_custom_call.1} parent=5 // pred_check
        _
      $region10: #{tpu_custom_call.1} parent=5 // pred_check_branch
        %239 = sbr.rel (%p236) target = $region12
      $region11: #{tpu_custom_call.1} parent=5 // pred_region
        %s240 = ssub.s32 %s23, 1
        // Predicated region
        $region13: #{tpu_custom_call.1} parent=11 // pred_check
          %p241 = pneg %p156
        $region14: #{tpu_custom_call.1} parent=11 // pred_check_branch
          %243 = sbr.rel (%p241) target = $region16
        $region15: #{tpu_custom_call.1} parent=11 // pred_region
          %s245 = ssub.s32 2048, 2048
          %246 = vsyncadd [#allocation9], %s245
          %s247 = sshll.u32 [#allocation8], 4
          %s248 = int_to_ptr.vmem [resolvable:$true] %s247
          %253 = dma.hbm_to_vmem [thread:$0]  %s3, 2048, %s248, [#allocation9], 128, 128, 8
        $region16: #{tpu_custom_call.1} parent=11 // pred_fallthru
          _
        // Predicated region
        $region17: #{tpu_custom_call.1} parent=11 // pred_check
          %p254 = pneg %p177
        $region18: #{tpu_custom_call.1} parent=11 // pred_check_branch
          %256 = sbr.rel (%p254) target = $region20
        $region19: #{tpu_custom_call.1} parent=11 // pred_region
          %s258 = ssub.s32 18432, 18432
          %259 = vsyncadd [#allocation9], %s258
          %s260 = sshll.u32 [#allocation10], 4
          %s261 = int_to_ptr.vmem [resolvable:$true] %s260
          %266 = dma.hbm_to_vmem [thread:$0]  %s4, 18432, %s261, [#allocation9], 128, 128, 8
        $region20: #{tpu_custom_call.1} parent=11 // pred_fallthru
          _
        // Predicated region
        $region21: #{tpu_custom_call.1} parent=11 // pred_check
          %p267 = pneg %p198
        $region22: #{tpu_custom_call.1} parent=11 // pred_check_branch
          %269 = sbr.rel (%p267) target = $region24
        $region23: #{tpu_custom_call.1} parent=11 // pred_region
          %s271 = ssub.s32 2048, 2048
          %272 = vsyncadd [#allocation12], %s271
          %s273 = sshll.u32 [#allocation11], 4
          %s274 = int_to_ptr.vmem [resolvable:$true] %s273
          %279 = dma.hbm_to_vmem [thread:$0]  %s5, 2048, %s274, [#allocation12], 128, 128, 8
        $region24: #{tpu_custom_call.1} parent=11 // pred_fallthru
          _
      $region12: #{tpu_custom_call.1} parent=5 // pred_fallthru
        _
      %p280 = scmp.lt.s32.totalorder %s23, 4
      // Predicated region
      $region25: #{tpu_custom_call.1} parent=5 // pred_check
        %p281 = pneg %p280
      $region26: #{tpu_custom_call.1} parent=5 // pred_check_branch
        %283 = sbr.rel (%p281) target = $region28
      $region27: #{tpu_custom_call.1} parent=5 // pred_region
        // Predicated region
        $region29: #{tpu_custom_call.1} parent=27 // pred_check
          %p284 = pneg %p57
        $region30: #{tpu_custom_call.1} parent=27 // pred_check_branch
          %286 = sbr.rel (%p284) target = $region32
        $region31: #{tpu_custom_call.1} parent=27 // pred_region
          %s287 = sand.u32 %s47, 1
          %s288 = scalar_lea.sflag [#allocation3], %s287
          %s289 = sand.u32 %s47, 1
          %s290 = smul.addr %s289, 128
          %s291 = scalar_lea.vmem [#allocation2], %s290
          %s292 = smul.u32 8, %s31
          %s294 = ssub.s32 2048, 2048
          %295 = vsyncadd %s288, %s294
          %s296 = smul.addr %s292, 2
          %s297 = smul.addr %s30, 32
          %s298 = sadd.s32 %s296, %s297
          %s299 = smul.addr %s298, 128
          %s300 = scalar_lea.hbm %s0, %s299
          %s301 = sshll.u32 %s291, 4
          %s302 = int_to_ptr.vmem [resolvable:$true] %s301
          %307 = dma.hbm_to_vmem [thread:$0]  %s300, 2048, %s302, %s288, 128, 128, 8
        $region32: #{tpu_custom_call.1} parent=27 // pred_fallthru
          _
        // Predicated region
        $region33: #{tpu_custom_call.1} parent=27 // pred_check
          %p308 = pneg %p93
        $region34: #{tpu_custom_call.1} parent=27 // pred_check_branch
          %310 = sbr.rel (%p308) target = $region36
        $region35: #{tpu_custom_call.1} parent=27 // pred_region
          %s311 = sand.u32 %s23, 1
          %s312 = scalar_lea.sflag [#allocation6], %s311
          %s313 = sand.u32 %s83, 1
          %s314 = smul.addr %s313, 16
          %s315 = scalar_lea.vmem [#allocation5], %s314
          %s316 = smul.u32 %s31, 8
          %s317 = ssub.s32 %s316, 1
          %p318 = scmp.gt.s32.totalorder %s317, 0
          %s319 = scalar_select %p318, %s317, 0
          %s321 = ssub.s32 256, 256
          %322 = vsyncadd %s312, %s321
          %s323 = smul.addr %s319, 2
          %s324 = smul.addr %s30, 32
          %s325 = sadd.s32 %s323, %s324
          %s326 = smul.addr %s325, 128
          %s327 = scalar_lea.hbm %s1, %s326
          %s328 = sshll.u32 %s315, 4
          %s329 = int_to_ptr.vmem [resolvable:$true] %s328
          %334 = dma.hbm_to_vmem [thread:$0]  %s327, 256, %s329, %s312, 128, 128, 8
        $region36: #{tpu_custom_call.1} parent=27 // pred_fallthru
          _
        // Predicated region
        $region37: #{tpu_custom_call.1} parent=27 // pred_check
          %p335 = pneg %p129
        $region38: #{tpu_custom_call.1} parent=27 // pred_check_branch
          %337 = sbr.rel (%p335) target = $region40
        $region39: #{tpu_custom_call.1} parent=27 // pred_region
          %s338 = sand.u32 %s23, 1
          %s339 = scalar_lea.sflag [#allocation6], %s338
          %s340 = sand.u32 %s119, 1
          %s341 = smul.addr %s340, 16
          %s342 = scalar_lea.vmem [#allocation7], %s341
          %s343 = smul.u32 %s31, 8
          %s344 = sadd.s32 %s343, 8
          %p345 = scmp.lt.s32.totalorder %s344, 15
          %s346 = scalar_select %p345, %s344, 15
          %s348 = ssub.s32 256, 256
          %349 = vsyncadd %s339, %s348
          %s350 = smul.addr %s346, 2
          %s351 = smul.addr %s30, 32
          %s352 = sadd.s32 %s350, %s351
          %s353 = smul.addr %s352, 128
          %s354 = scalar_lea.hbm %s2, %s353
          %s355 = sshll.u32 %s342, 4
          %s356 = int_to_ptr.vmem [resolvable:$true] %s355
          %361 = dma.hbm_to_vmem [thread:$0]  %s354, 256, %s356, %s339, 128, 128, 8
        $region40: #{tpu_custom_call.1} parent=27 // pred_fallthru
          _
      $region28: #{tpu_custom_call.1} parent=5 // pred_fallthru
        _
      %p362 = scmp.le.s32.totalorder 1, %s23
      %p363 = scmp.lt.s32.totalorder %s23, 5
      %p364 = pnand %p362, %p363
      %p365 = pneg %p364
      // Predicated region
      $region41: #{tpu_custom_call.1} parent=5 // pred_check
        _
      $region42: #{tpu_custom_call.1} parent=5 // pred_check_branch
        %367 = sbr.rel (%p364) target = $region44
      $region43: #{tpu_custom_call.1} parent=5 // pred_region
        %s368 = ssub.s32 %s23, 1
        %s369 = sand.u32 %s50, 1
        %s370 = scalar_lea.sflag [#allocation3], %s369
        %s371 = sand.u32 %s50, 1
        %s372 = smul.addr %s371, 128
        %s373 = scalar_lea.vmem [#allocation2], %s372
        // Predicated region
        $region45: #{tpu_custom_call.1} parent=43 // pred_check
          %p374 = pneg %p63
        $region46: #{tpu_custom_call.1} parent=43 // pred_check_branch
          %376 = sbr.rel (%p374) target = $region48
        $region47: #{tpu_custom_call.1} parent=43 // pred_region
          %377 = dma.done %s370, 2048
        $region48: #{tpu_custom_call.1} parent=43 // pred_fallthru
          _
        %s378 = sand.u32 %s28, 1
        %s379 = scalar_lea.sflag [#allocation6], %s378
        %s380 = sand.u32 %s86, 1
        %s381 = smul.addr %s380, 16
        %s382 = scalar_lea.vmem [#allocation5], %s381
        // Predicated region
        $region49: #{tpu_custom_call.1} parent=43 // pred_check
          %p383 = pneg %p99
        $region50: #{tpu_custom_call.1} parent=43 // pred_check_branch
          %385 = sbr.rel (%p383) target = $region52
        $region51: #{tpu_custom_call.1} parent=43 // pred_region
          %386 = dma.done %s379, 256
        $region52: #{tpu_custom_call.1} parent=43 // pred_fallthru
          _
        %s387 = sand.u32 %s28, 1
        %s388 = scalar_lea.sflag [#allocation6], %s387
        %s389 = sand.u32 %s122, 1
        %s390 = smul.addr %s389, 16
        %s391 = scalar_lea.vmem [#allocation7], %s390
        // Predicated region
        $region53: #{tpu_custom_call.1} parent=43 // pred_check
          %p392 = pneg %p135
        $region54: #{tpu_custom_call.1} parent=43 // pred_check_branch
          %394 = sbr.rel (%p392) target = $region56
        $region55: #{tpu_custom_call.1} parent=43 // pred_region
          %395 = dma.done %s388, 256
        $region56: #{tpu_custom_call.1} parent=43 // pred_fallthru
          _
        // Predicated region
        $region57: #{tpu_custom_call.1} parent=43 // pred_check
          %p396 = pneg %p156
        $region58: #{tpu_custom_call.1} parent=43 // pred_check_branch
          %398 = sbr.rel (%p396) target = $region60
        $region59: #{tpu_custom_call.1} parent=43 // pred_region
          %399 = dma.done [#allocation9], 2048
        $region60: #{tpu_custom_call.1} parent=43 // pred_fallthru
          _
        // Predicated region
        $region61: #{tpu_custom_call.1} parent=43 // pred_check
          %p400 = pneg %p177
        $region62: #{tpu_custom_call.1} parent=43 // pred_check_branch
          %402 = sbr.rel (%p400) target = $region64
        $region63: #{tpu_custom_call.1} parent=43 // pred_region
          %403 = dma.done [#allocation9], 18432
        $region64: #{tpu_custom_call.1} parent=43 // pred_fallthru
          _
        // Predicated region
        $region65: #{tpu_custom_call.1} parent=43 // pred_check
          %p404 = pneg %p198
        $region66: #{tpu_custom_call.1} parent=43 // pred_check_branch
          %406 = sbr.rel (%p404) target = $region68
        $region67: #{tpu_custom_call.1} parent=43 // pred_region
          %407 = dma.done [#allocation12], 2048
        $region68: #{tpu_custom_call.1} parent=43 // pred_fallthru
          _
        %s408 = sand.u32 %s50, 1
        %s409 = scalar_lea.sflag [#allocation3], %s408
        %s410 = sand.u32 %s50, 1
        %s411 = smul.addr %s410, 128
        %s412 = scalar_lea.vmem [#allocation2], %s411
        %p413 = pneg %p63
        %p414 = pneg %p60
        %s415 = sand.u32 %s28, 1
        %s416 = scalar_lea.sflag [#allocation6], %s415
        %s417 = sand.u32 %s86, 1
        %s418 = smul.addr %s417, 16
        %s419 = scalar_lea.vmem [#allocation5], %s418
        %p420 = pneg %p99
        %p421 = pneg %p96
        %s422 = sand.u32 %s28, 1
        %s423 = scalar_lea.sflag [#allocation6], %s422
        %s424 = sand.u32 %s122, 1
        %s425 = smul.addr %s424, 16
        %s426 = scalar_lea.vmem [#allocation7], %s425
        %p427 = pneg %p135
        %p428 = pneg %p132
        %p429 = pneg %p156
        %p430 = pneg %p153
        %p431 = pneg %p177
        %p432 = pneg %p174
        %p433 = pneg %p198
        %p434 = pneg %p195
        %p435 = pneg %p226
        %p436 = pneg %p223
        %s437 = sand.u32 %s213, 1
        %s438 = scalar_lea.sflag [#allocation4], %s437
        %s439 = sand.u32 %s213, 1
        %s440 = smul.addr %s439, 128
        %s441 = scalar_lea.vmem [#allocation13], %s440
        %s442 = smul.u32 8, %s33
        %s443 = smul.u32 %s33, 8
        %s444 = ssub.s32 %s443, 1
        %p445 = scmp.gt.s32.totalorder %s444, 0
        %s446 = scalar_select %p445, %s444, 0
        %s447 = smul.u32 %s33, 8
        %s448 = sadd.s32 %s447, 8
        %p449 = scmp.lt.s32.totalorder %s448, 15
        %s450 = scalar_select %p449, %s448, 15
        %s451 = smul.u32 8, %s33
        %p452 = scmp.gt.s32.totalorder %s33, 0
        %s453 = scalar_select %p452, 1.0, 0.0
        %p454 = scmp.lt.s32.totalorder %s33, 1
        %s455 = scalar_select %p454, 1.0, 0.0
        %v456 = vld [vmem:[%s373] sm:$0xff]
        %v457 = vld [vmem:[%s373 + $0x8] sm:$0xff]
        %v458 = vld [vmem:[%s373 + $0x10] sm:$0xff]
        %v459 = vld [vmem:[%s373 + $0x18] sm:$0xff]
        %v460 = vld [vmem:[%s373 + $0x20] sm:$0xff]
        %v461 = vld [vmem:[%s373 + $0x28] sm:$0xff]
        %v462 = vld [vmem:[%s373 + $0x30] sm:$0xff]
        %v463 = vld [vmem:[%s373 + $0x38] sm:$0xff]
        %v464 = vld [vmem:[%s373 + $0x40] sm:$0xff]
        %v465 = vld [vmem:[%s373 + $0x48] sm:$0xff]
        %v466 = vld [vmem:[%s373 + $0x50] sm:$0xff]
        %v467 = vld [vmem:[%s373 + $0x58] sm:$0xff]
        %v468 = vld [vmem:[%s373 + $0x60] sm:$0xff]
        %v469 = vld [vmem:[%s373 + $0x68] sm:$0xff]
        %v470 = vld [vmem:[%s373 + $0x70] sm:$0xff]
        %v471 = vld [vmem:[%s373 + $0x78] sm:$0xff]
        %v472 = vld [vmem:[%s382] sm:$0xff]
        %v473 = vld [vmem:[%s382 + $0x8] sm:$0xff]
        %v474 = vstv %s453
        %v475 = vmul.f32 %v472, %v474
        %v476 = vmul.f32 %v473, %v474
        %v477 = vld [vmem:[%s391] sm:$0xff]
        %v478 = vld [vmem:[%s391 + $0x8] sm:$0xff]
        %v479 = vstv %s455
        %v480 = vmul.f32 %v477, %v479
        %v481 = vmul.f32 %v478, %v479
        %v482 = vld [vmem:[#allocation8] sm:$0xff]
        %v483 = vld [vmem:[#allocation8 + $0x8] sm:$0xff]
        %v484 = vld [vmem:[#allocation8 + $0x10] sm:$0xff]
        %v485 = vld [vmem:[#allocation8 + $0x18] sm:$0xff]
        %v486 = vld [vmem:[#allocation8 + $0x20] sm:$0xff]
        %v487 = vld [vmem:[#allocation8 + $0x28] sm:$0xff]
        %v488 = vld [vmem:[#allocation8 + $0x30] sm:$0xff]
        %v489 = vld [vmem:[#allocation8 + $0x38] sm:$0xff]
        %v490 = vld [vmem:[#allocation8 + $0x40] sm:$0xff]
        %v491 = vld [vmem:[#allocation8 + $0x48] sm:$0xff]
        %v492 = vld [vmem:[#allocation8 + $0x50] sm:$0xff]
        %v493 = vld [vmem:[#allocation8 + $0x58] sm:$0xff]
        %v494 = vld [vmem:[#allocation8 + $0x60] sm:$0xff]
        %v495 = vld [vmem:[#allocation8 + $0x68] sm:$0xff]
        %v496 = vld [vmem:[#allocation8 + $0x70] sm:$0xff]
        %v497 = vld [vmem:[#allocation8 + $0x78] sm:$0xff]
        %498 = vmatprep.subr.mxu0 0.0
        %499 = vmatpush1.msra.mxu0 %v497
        %500 = vmatprep.subr.mxu0 0.0
        %501 = vmatpush1.msra.mxu0 %v496
        %502 = vmatprep.subr.mxu0 0.0
        %503 = vmatpush1.msra.mxu0 %v495
        %504 = vmatprep.subr.mxu0 0.0
        %505 = vmatpush1.msra.mxu0 %v494
        %506 = vmatprep.subr.mxu0 0.0
        %507 = vmatpush1.msra.mxu0 %v493
        %508 = vmatprep.subr.mxu0 0.0
        %509 = vmatpush1.msra.mxu0 %v492
        %510 = vmatprep.subr.mxu0 0.0
        %511 = vmatpush1.msra.mxu0 %v491
        %512 = vmatprep.subr.mxu0 0.0
        %513 = vmatpush1.msra.mxu0 %v490
        %514 = vmatprep.subr.mxu0 0.0
        %515 = vmatpush1.msra.mxu0 %v489
        %516 = vmatprep.subr.mxu0 0.0
        %517 = vmatpush1.msra.mxu0 %v488
        %518 = vmatprep.subr.mxu0 0.0
        %519 = vmatpush1.msra.mxu0 %v487
        %520 = vmatprep.subr.mxu0 0.0
        %521 = vmatpush1.msra.mxu0 %v486
        %522 = vmatprep.subr.mxu0 0.0
        %523 = vmatpush1.msra.mxu0 %v485
        %524 = vmatprep.subr.mxu0 0.0
        %525 = vmatpush1.msra.mxu0 %v484
        %526 = vmatprep.subr.mxu0 0.0
        %527 = vmatpush1.msra.mxu0 %v483
        %528 = vmatprep.subr.mxu0 0.0
        %529 = vmatpush1.msra.mxu0 %v482
        %530 = vmatprep.subr.mxu0 0.0
        %531 = vmatpush2.msra.mxu0 0.0
        %532 = vmatprep.subr.mxu0 0.0
        %533 = vmatpush2.msra.mxu0 0.0
        %534 = vmatprep.subr.mxu0 0.0
        %535 = vmatpush2.msra.mxu0 0.0
        %536 = vmatprep.subr.mxu0 0.0
        %537 = vmatpush2.msra.mxu0 0.0
        %538 = vmatprep.subr.mxu0 0.0
        %539 = vmatpush2.msra.mxu0 0.0
        %540 = vmatprep.subr.mxu0 0.0
        %541 = vmatpush2.msra.mxu0 0.0
        %542 = vmatprep.subr.mxu0 0.0
        %543 = vmatpush2.msra.mxu0 0.0
        %544 = vmatprep.subr.mxu0 0.0
        %545 = vmatpush2.msra.mxu0 0.0
        %546 = vmatprep.subr.mxu0 0.0
        %547 = vmatpush2.msra.mxu0 0.0
        %548 = vmatprep.subr.mxu0 0.0
        %549 = vmatpush2.msra.mxu0 0.0
        %550 = vmatprep.subr.mxu0 0.0
        %551 = vmatpush2.msra.mxu0 0.0
        %552 = vmatprep.subr.mxu0 0.0
        %553 = vmatpush2.msra.mxu0 0.0
        %554 = vmatprep.subr.mxu0 0.0
        %555 = vmatpush2.msra.mxu0 0.0
        %556 = vmatprep.subr.mxu0 0.0
        %557 = vmatpush2.msra.mxu0 0.0
        %558 = vmatprep.subr.mxu0 0.0
        %559 = vmatpush2.msra.mxu0 0.0
        %560 = vmatprep.subr.mxu0 0.0
        %561 = vmatpush2.msra.mxu0 0.0
        %562 = vmatprep.mubr.f32.mxu0 0.0
        %563 = vmatmul.mubr.f32.gmra.mxu0 %v475
        %v564 = vpop.f32.mrf.mxu0
        %v565 = vadd.f32 0.0, %v564
        %v566 = vpop.f32.mrf.mxu0
        %567 = vmatprep.mubr.f32.mxu0 0.0
        %568 = vmatmul.mubr.f32.gmra.mxu0 %v476
        %v569 = vpop.f32.mrf.mxu0
        %v570 = vadd.f32 0.0, %v569
        %v571 = vpop.f32.mrf.mxu0
        %572 = vmatprep.mubr.f32.mxu0 0.0
        %573 = vmatmul.mubr.f32.gmra.mxu0 %v456
        %v574 = vpop.f32.mrf.mxu0
        %v575 = vadd.f32 0.0, %v574
        %v576 = vpop.f32.mrf.mxu0
        %577 = vmatprep.mubr.f32.mxu0 0.0
        %578 = vmatmul.mubr.f32.gmra.mxu0 %v457
        %v579 = vpop.f32.mrf.mxu0
        %v580 = vadd.f32 0.0, %v579
        %v581 = vpop.f32.mrf.mxu0
        %582 = vmatprep.mubr.f32.mxu0 0.0
        %583 = vmatmul.mubr.f32.gmra.mxu0 %v458
        %v584 = vpop.f32.mrf.mxu0
        %v585 = vadd.f32 0.0, %v584
        %v586 = vpop.f32.mrf.mxu0
        %587 = vmatprep.mubr.f32.mxu0 0.0
        %588 = vmatmul.mubr.f32.gmra.mxu0 %v459
        %v589 = vpop.f32.mrf.mxu0
        %v590 = vadd.f32 0.0, %v589
        %v591 = vpop.f32.mrf.mxu0
        %592 = vmatprep.mubr.f32.mxu0 0.0
        %593 = vmatmul.mubr.f32.gmra.mxu0 %v460
        %v594 = vpop.f32.mrf.mxu0
        %v595 = vadd.f32 0.0, %v594
        %v596 = vpop.f32.mrf.mxu0
        %597 = vmatprep.mubr.f32.mxu0 0.0
        %598 = vmatmul.mubr.f32.gmra.mxu0 %v461
        %v599 = vpop.f32.mrf.mxu0
        %v600 = vadd.f32 0.0, %v599
        %v601 = vpop.f32.mrf.mxu0
        %602 = vmatprep.mubr.f32.mxu0 0.0
        %603 = vmatmul.mubr.f32.gmra.mxu0 %v462
        %v604 = vpop.f32.mrf.mxu0
        %v605 = vadd.f32 0.0, %v604
        %v606 = vpop.f32.mrf.mxu0
        %607 = vmatprep.mubr.f32.mxu0 0.0
        %608 = vmatmul.mubr.f32.gmra.mxu0 %v463
        %v609 = vpop.f32.mrf.mxu0
        %v610 = vadd.f32 0.0, %v609
        %v611 = vpop.f32.mrf.mxu0
        %612 = vmatprep.mubr.f32.mxu0 0.0
        %613 = vmatmul.mubr.f32.gmra.mxu0 %v464
        %v614 = vpop.f32.mrf.mxu0
        %v615 = vadd.f32 0.0, %v614
        %v616 = vpop.f32.mrf.mxu0
        %617 = vmatprep.mubr.f32.mxu0 0.0
        %618 = vmatmul.mubr.f32.gmra.mxu0 %v465
        %v619 = vpop.f32.mrf.mxu0
        %v620 = vadd.f32 0.0, %v619
        %v621 = vpop.f32.mrf.mxu0
        %622 = vmatprep.mubr.f32.mxu0 0.0
        %623 = vmatmul.mubr.f32.gmra.mxu0 %v466
        %v624 = vpop.f32.mrf.mxu0
        %v625 = vadd.f32 0.0, %v624
        %v626 = vpop.f32.mrf.mxu0
        %627 = vmatprep.mubr.f32.mxu0 0.0
        %628 = vmatmul.mubr.f32.gmra.mxu0 %v467
        %v629 = vpop.f32.mrf.mxu0
        %v630 = vadd.f32 0.0, %v629
        %v631 = vpop.f32.mrf.mxu0
        %632 = vmatprep.mubr.f32.mxu0 0.0
        %633 = vmatmul.mubr.f32.gmra.mxu0 %v468
        %v634 = vpop.f32.mrf.mxu0
        %v635 = vadd.f32 0.0, %v634
        %v636 = vpop.f32.mrf.mxu0
        %637 = vmatprep.mubr.f32.mxu0 0.0
        %638 = vmatmul.mubr.f32.gmra.mxu0 %v469
        %v639 = vpop.f32.mrf.mxu0
        %v640 = vadd.f32 0.0, %v639
        %v641 = vpop.f32.mrf.mxu0
        %642 = vmatprep.mubr.f32.mxu0 0.0
        %643 = vmatmul.mubr.f32.gmra.mxu0 %v470
        %v644 = vpop.f32.mrf.mxu0
        %v645 = vadd.f32 0.0, %v644
        %v646 = vpop.f32.mrf.mxu0
        %647 = vmatprep.mubr.f32.mxu0 0.0
        %648 = vmatmul.mubr.f32.gmra.mxu0 %v471
        %v649 = vpop.f32.mrf.mxu0
        %v650 = vadd.f32 0.0, %v649
        %v651 = vpop.f32.mrf.mxu0
        %652 = vmatprep.mubr.f32.mxu0 0.0
        %653 = vmatmul.mubr.f32.gmra.mxu0 %v480
        %v654 = vpop.f32.mrf.mxu0
        %v655 = vadd.f32 0.0, %v654
        %v656 = vpop.f32.mrf.mxu0
        %657 = vmatprep.mubr.f32.mxu0 0.0
        %658 = vmatmul.mubr.f32.gmra.mxu0 %v481
        %v659 = vpop.f32.mrf.mxu0
        %v660 = vadd.f32 0.0, %v659
        %v661 = vpop.f32.mrf.mxu0
        %662 = vdwg.mxu0
        %v663 = vmax.f32 %v565, 0.0
        %v664 = vmax.f32 %v570, 0.0
        %v665 = vmax.f32 %v575, 0.0
        %v666 = vmax.f32 %v580, 0.0
        %v667 = vmax.f32 %v585, 0.0
        %v668 = vmax.f32 %v590, 0.0
        %v669 = vmax.f32 %v595, 0.0
        %v670 = vmax.f32 %v600, 0.0
        %v671 = vmax.f32 %v605, 0.0
        %v672 = vmax.f32 %v610, 0.0
        %v673 = vmax.f32 %v615, 0.0
        %v674 = vmax.f32 %v620, 0.0
        %v675 = vmax.f32 %v625, 0.0
        %v676 = vmax.f32 %v630, 0.0
        %v677 = vmax.f32 %v635, 0.0
        %v678 = vmax.f32 %v640, 0.0
        %v679 = vmax.f32 %v645, 0.0
        %v680 = vmax.f32 %v650, 0.0
        %v681 = vmax.f32 %v655, 0.0
        %v682 = vmax.f32 %v660, 0.0
        %vm703 = vcmask 1040384
        %v704 = vrot.slane %v663, 7
        %v705 = vrot.slane %v664, 7
        %v706 = vsel %vm703, %v704, %v705
        %v707 = vrot.slane %v665, 7
        %v708 = vrot.slane %v666, 7
        %v709 = vsel %vm703, %v707, %v708
        %v710 = vrot.slane %v667, 7
        %v711 = vrot.slane %v668, 7
        %v712 = vsel %vm703, %v710, %v711
        %v713 = vrot.slane %v669, 7
        %v714 = vrot.slane %v670, 7
        %v715 = vsel %vm703, %v713, %v714
        %v716 = vrot.slane %v671, 7
        %v717 = vrot.slane %v672, 7
        %v718 = vsel %vm703, %v716, %v717
        %v719 = vrot.slane %v673, 7
        %v720 = vrot.slane %v674, 7
        %v721 = vsel %vm703, %v719, %v720
        %v722 = vrot.slane %v675, 7
        %v723 = vrot.slane %v676, 7
        %v724 = vsel %vm703, %v722, %v723
        %v725 = vrot.slane %v677, 7
        %v726 = vrot.slane %v678, 7
        %v727 = vsel %vm703, %v725, %v726
        %v728 = vrot.slane %v679, 7
        %v729 = vrot.slane %v680, 7
        %v730 = vsel %vm703, %v728, %v729
        %v731 = vrot.slane %v681, 7
        %v732 = vrot.slane %v682, 7
        %v733 = vsel %vm703, %v731, %v732
        %v754 = vsel %vm703, 0.0, %v704
        %v755 = vsel %vm703, 0.0, %v707
        %v756 = vsel %vm703, 0.0, %v710
        %v757 = vsel %vm703, 0.0, %v713
        %v758 = vsel %vm703, 0.0, %v716
        %v759 = vsel %vm703, 0.0, %v719
        %v760 = vsel %vm703, 0.0, %v722
        %v761 = vsel %vm703, 0.0, %v725
        %v762 = vsel %vm703, 0.0, %v728
        %v763 = vsel %vm703, 0.0, %v731
        %vm764 = vcmask 1046528
        %v765 = vrot.slane %v663, 1
        %v766 = vrot.slane %v664, 1
        %v767 = vsel %vm764, %v765, %v766
        %v768 = vrot.slane %v665, 1
        %v769 = vrot.slane %v666, 1
        %v770 = vsel %vm764, %v768, %v769
        %v771 = vrot.slane %v667, 1
        %v772 = vrot.slane %v668, 1
        %v773 = vsel %vm764, %v771, %v772
        %v774 = vrot.slane %v669, 1
        %v775 = vrot.slane %v670, 1
        %v776 = vsel %vm764, %v774, %v775
        %v777 = vrot.slane %v671, 1
        %v778 = vrot.slane %v672, 1
        %v779 = vsel %vm764, %v777, %v778
        %v780 = vrot.slane %v673, 1
        %v781 = vrot.slane %v674, 1
        %v782 = vsel %vm764, %v780, %v781
        %v783 = vrot.slane %v675, 1
        %v784 = vrot.slane %v676, 1
        %v785 = vsel %vm764, %v783, %v784
        %v786 = vrot.slane %v677, 1
        %v787 = vrot.slane %v678, 1
        %v788 = vsel %vm764, %v786, %v787
        %v789 = vrot.slane %v679, 1
        %v790 = vrot.slane %v680, 1
        %v791 = vsel %vm764, %v789, %v790
        %v792 = vrot.slane %v681, 1
        %v793 = vrot.slane %v682, 1
        %v794 = vsel %vm764, %v792, %v793
        %v815 = vsel %vm764, %v766, 0.0
        %v816 = vsel %vm764, %v769, 0.0
        %v817 = vsel %vm764, %v772, 0.0
        %v818 = vsel %vm764, %v775, 0.0
        %v819 = vsel %vm764, %v778, 0.0
        %v820 = vsel %vm764, %v781, 0.0
        %v821 = vsel %vm764, %v784, 0.0
        %v822 = vsel %vm764, %v787, 0.0
        %v823 = vsel %vm764, %v790, 0.0
        %v824 = vsel %vm764, %v793, 0.0
        %v825 = vld [vmem:[#allocation10] sm:$0xff]
        %v826 = vld [vmem:[#allocation10 + $0x8] sm:$0xff]
        %v827 = vld [vmem:[#allocation10 + $0x10] sm:$0xff]
        %v828 = vld [vmem:[#allocation10 + $0x18] sm:$0xff]
        %v829 = vld [vmem:[#allocation10 + $0x20] sm:$0xff]
        %v830 = vld [vmem:[#allocation10 + $0x28] sm:$0xff]
        %v831 = vld [vmem:[#allocation10 + $0x30] sm:$0xff]
        %v832 = vld [vmem:[#allocation10 + $0x38] sm:$0xff]
        %v833 = vld [vmem:[#allocation10 + $0x40] sm:$0xff]
        %v834 = vld [vmem:[#allocation10 + $0x48] sm:$0xff]
        %v835 = vld [vmem:[#allocation10 + $0x50] sm:$0xff]
        %v836 = vld [vmem:[#allocation10 + $0x58] sm:$0xff]
        %v837 = vld [vmem:[#allocation10 + $0x60] sm:$0xff]
        %v838 = vld [vmem:[#allocation10 + $0x68] sm:$0xff]
        %v839 = vld [vmem:[#allocation10 + $0x70] sm:$0xff]
        %v840 = vld [vmem:[#allocation10 + $0x78] sm:$0xff]
        %s841 = scalar_lea.vmem [#allocation10], 128
        %v842 = vld [vmem:[%s841] sm:$0xff]
        %v843 = vld [vmem:[%s841 + $0x8] sm:$0xff]
        %v844 = vld [vmem:[%s841 + $0x10] sm:$0xff]
        %v845 = vld [vmem:[%s841 + $0x18] sm:$0xff]
        %v846 = vld [vmem:[%s841 + $0x20] sm:$0xff]
        %v847 = vld [vmem:[%s841 + $0x28] sm:$0xff]
        %v848 = vld [vmem:[%s841 + $0x30] sm:$0xff]
        %v849 = vld [vmem:[%s841 + $0x38] sm:$0xff]
        %v850 = vld [vmem:[%s841 + $0x40] sm:$0xff]
        %v851 = vld [vmem:[%s841 + $0x48] sm:$0xff]
        %v852 = vld [vmem:[%s841 + $0x50] sm:$0xff]
        %v853 = vld [vmem:[%s841 + $0x58] sm:$0xff]
        %v854 = vld [vmem:[%s841 + $0x60] sm:$0xff]
        %v855 = vld [vmem:[%s841 + $0x68] sm:$0xff]
        %v856 = vld [vmem:[%s841 + $0x70] sm:$0xff]
        %v857 = vld [vmem:[%s841 + $0x78] sm:$0xff]
        %858 = vmatprep.subr.mxu0 0.0
        %859 = vmatpush1.msra.mxu0 %v857
        %860 = vmatprep.subr.mxu0 0.0
        %861 = vmatpush1.msra.mxu0 %v856
        %862 = vmatprep.subr.mxu0 0.0
        %863 = vmatpush1.msra.mxu0 %v855
        %864 = vmatprep.subr.mxu0 0.0
        %865 = vmatpush1.msra.mxu0 %v854
        %866 = vmatprep.subr.mxu0 0.0
        %867 = vmatpush1.msra.mxu0 %v853
        %868 = vmatprep.subr.mxu0 0.0
        %869 = vmatpush1.msra.mxu0 %v852
        %870 = vmatprep.subr.mxu0 0.0
        %871 = vmatpush1.msra.mxu0 %v851
        %872 = vmatprep.subr.mxu0 0.0
        %873 = vmatpush1.msra.mxu0 %v850
        %874 = vmatprep.subr.mxu0 0.0
        %875 = vmatpush1.msra.mxu0 %v849
        %876 = vmatprep.subr.mxu0 0.0
        %877 = vmatpush1.msra.mxu0 %v848
        %878 = vmatprep.subr.mxu0 0.0
        %879 = vmatpush1.msra.mxu0 %v847
        %880 = vmatprep.subr.mxu0 0.0
        %881 = vmatpush1.msra.mxu0 %v846
        %882 = vmatprep.subr.mxu0 0.0
        %883 = vmatpush1.msra.mxu0 %v845
        %884 = vmatprep.subr.mxu0 0.0
        %885 = vmatpush1.msra.mxu0 %v844
        %886 = vmatprep.subr.mxu0 0.0
        %887 = vmatpush1.msra.mxu0 %v843
        %888 = vmatprep.subr.mxu0 0.0
        %889 = vmatpush1.msra.mxu0 %v842
        %890 = vmatprep.subr.mxu0 0.0
        %891 = vmatpush2.msra.mxu0 0.0
        %892 = vmatprep.subr.mxu0 0.0
        %893 = vmatpush2.msra.mxu0 0.0
        %894 = vmatprep.subr.mxu0 0.0
        %895 = vmatpush2.msra.mxu0 0.0
        %896 = vmatprep.subr.mxu0 0.0
        %897 = vmatpush2.msra.mxu0 0.0
        %898 = vmatprep.subr.mxu0 0.0
        %899 = vmatpush2.msra.mxu0 0.0
        %900 = vmatprep.subr.mxu0 0.0
        %901 = vmatpush2.msra.mxu0 0.0
        %902 = vmatprep.subr.mxu0 0.0
        %903 = vmatpush2.msra.mxu0 0.0
        %904 = vmatprep.subr.mxu0 0.0
        %905 = vmatpush2.msra.mxu0 0.0
        %906 = vmatprep.subr.mxu0 0.0
        %907 = vmatpush2.msra.mxu0 0.0
        %908 = vmatprep.subr.mxu0 0.0
        %909 = vmatpush2.msra.mxu0 0.0
        %910 = vmatprep.subr.mxu0 0.0
        %911 = vmatpush2.msra.mxu0 0.0
        %912 = vmatprep.subr.mxu0 0.0
        %913 = vmatpush2.msra.mxu0 0.0
        %914 = vmatprep.subr.mxu0 0.0
        %915 = vmatpush2.msra.mxu0 0.0
        %916 = vmatprep.subr.mxu0 0.0
        %917 = vmatpush2.msra.mxu0 0.0
        %918 = vmatprep.subr.mxu0 0.0
        %919 = vmatpush2.msra.mxu0 0.0
        %920 = vmatprep.subr.mxu0 0.0
        %921 = vmatpush2.msra.mxu0 0.0
        %922 = vmatprep.mubr.f32.mxu0 0.0
        %923 = vmatmul.mubr.f32.gmra.mxu0 %v663
        %v924 = vpop.f32.mrf.mxu0
        %v925 = vadd.f32 0.0, %v924
        %v926 = vpop.f32.mrf.mxu0
        %927 = vmatprep.mubr.f32.mxu0 0.0
        %928 = vmatmul.mubr.f32.gmra.mxu0 %v664
        %v929 = vpop.f32.mrf.mxu0
        %v930 = vadd.f32 0.0, %v929
        %v931 = vpop.f32.mrf.mxu0
        %932 = vmatprep.mubr.f32.mxu0 0.0
        %933 = vmatmul.mubr.f32.gmra.mxu0 %v665
        %v934 = vpop.f32.mrf.mxu0
        %v935 = vadd.f32 0.0, %v934
        %v936 = vpop.f32.mrf.mxu0
        %937 = vmatprep.mubr.f32.mxu0 0.0
        %938 = vmatmul.mubr.f32.gmra.mxu0 %v666
        %v939 = vpop.f32.mrf.mxu0
        %v940 = vadd.f32 0.0, %v939
        %v941 = vpop.f32.mrf.mxu0
        %942 = vmatprep.mubr.f32.mxu0 0.0
        %943 = vmatmul.mubr.f32.gmra.mxu0 %v667
        %v944 = vpop.f32.mrf.mxu0
        %v945 = vadd.f32 0.0, %v944
        %v946 = vpop.f32.mrf.mxu0
        %947 = vmatprep.mubr.f32.mxu0 0.0
        %948 = vmatmul.mubr.f32.gmra.mxu0 %v668
        %v949 = vpop.f32.mrf.mxu0
        %v950 = vadd.f32 0.0, %v949
        %v951 = vpop.f32.mrf.mxu0
        %952 = vmatprep.mubr.f32.mxu0 0.0
        %953 = vmatmul.mubr.f32.gmra.mxu0 %v669
        %v954 = vpop.f32.mrf.mxu0
        %v955 = vadd.f32 0.0, %v954
        %v956 = vpop.f32.mrf.mxu0
        %957 = vmatprep.mubr.f32.mxu0 0.0
        %958 = vmatmul.mubr.f32.gmra.mxu0 %v670
        %v959 = vpop.f32.mrf.mxu0
        %v960 = vadd.f32 0.0, %v959
        %v961 = vpop.f32.mrf.mxu0
        %962 = vmatprep.mubr.f32.mxu0 0.0
        %963 = vmatmul.mubr.f32.gmra.mxu0 %v671
        %v964 = vpop.f32.mrf.mxu0
        %v965 = vadd.f32 0.0, %v964
        %v966 = vpop.f32.mrf.mxu0
        %967 = vmatprep.mubr.f32.mxu0 0.0
        %968 = vmatmul.mubr.f32.gmra.mxu0 %v672
        %v969 = vpop.f32.mrf.mxu0
        %v970 = vadd.f32 0.0, %v969
        %v971 = vpop.f32.mrf.mxu0
        %972 = vmatprep.mubr.f32.mxu0 0.0
        %973 = vmatmul.mubr.f32.gmra.mxu0 %v673
        %v974 = vpop.f32.mrf.mxu0
        %v975 = vadd.f32 0.0, %v974
        %v976 = vpop.f32.mrf.mxu0
        %977 = vmatprep.mubr.f32.mxu0 0.0
        %978 = vmatmul.mubr.f32.gmra.mxu0 %v674
        %v979 = vpop.f32.mrf.mxu0
        %v980 = vadd.f32 0.0, %v979
        %v981 = vpop.f32.mrf.mxu0
        %982 = vmatprep.mubr.f32.mxu0 0.0
        %983 = vmatmul.mubr.f32.gmra.mxu0 %v675
        %v984 = vpop.f32.mrf.mxu0
        %v985 = vadd.f32 0.0, %v984
        %v986 = vpop.f32.mrf.mxu0
        %987 = vmatprep.mubr.f32.mxu0 0.0
        %988 = vmatmul.mubr.f32.gmra.mxu0 %v676
        %v989 = vpop.f32.mrf.mxu0
        %v990 = vadd.f32 0.0, %v989
        %v991 = vpop.f32.mrf.mxu0
        %992 = vmatprep.mubr.f32.mxu0 0.0
        %993 = vmatmul.mubr.f32.gmra.mxu0 %v677
        %v994 = vpop.f32.mrf.mxu0
        %v995 = vadd.f32 0.0, %v994
        %v996 = vpop.f32.mrf.mxu0
        %997 = vmatprep.mubr.f32.mxu0 0.0
        %998 = vmatmul.mubr.f32.gmra.mxu0 %v678
        %v999 = vpop.f32.mrf.mxu0
        %v1000 = vadd.f32 0.0, %v999
        %v1001 = vpop.f32.mrf.mxu0
        %1002 = vdwg.mxu0
        %1003 = vmatprep.subr.mxu0 0.0
        %1004 = vmatpush1.msra.mxu0 %v840
        %1005 = vmatprep.subr.mxu0 0.0
        %1006 = vmatpush1.msra.mxu0 %v839
        %1007 = vmatprep.subr.mxu0 0.0
        %1008 = vmatpush1.msra.mxu0 %v838
        %1009 = vmatprep.subr.mxu0 0.0
        %1010 = vmatpush1.msra.mxu0 %v837
        %1011 = vmatprep.subr.mxu0 0.0
        %1012 = vmatpush1.msra.mxu0 %v836
        %1013 = vmatprep.subr.mxu0 0.0
        %1014 = vmatpush1.msra.mxu0 %v835
        %1015 = vmatprep.subr.mxu0 0.0
        %1016 = vmatpush1.msra.mxu0 %v834
        %1017 = vmatprep.subr.mxu0 0.0
        %1018 = vmatpush1.msra.mxu0 %v833
        %1019 = vmatprep.subr.mxu0 0.0
        %1020 = vmatpush1.msra.mxu0 %v832
        %1021 = vmatprep.subr.mxu0 0.0
        %1022 = vmatpush1.msra.mxu0 %v831
        %1023 = vmatprep.subr.mxu0 0.0
        %1024 = vmatpush1.msra.mxu0 %v830
        %1025 = vmatprep.subr.mxu0 0.0
        %1026 = vmatpush1.msra.mxu0 %v829
        %1027 = vmatprep.subr.mxu0 0.0
        %1028 = vmatpush1.msra.mxu0 %v828
        %1029 = vmatprep.subr.mxu0 0.0
        %1030 = vmatpush1.msra.mxu0 %v827
        %1031 = vmatprep.subr.mxu0 0.0
        %1032 = vmatpush1.msra.mxu0 %v826
        %1033 = vmatprep.subr.mxu0 0.0
        %1034 = vmatpush1.msra.mxu0 %v825
        %1035 = vmatprep.subr.mxu0 0.0
        %1036 = vmatpush2.msra.mxu0 0.0
        %1037 = vmatprep.subr.mxu0 0.0
        %1038 = vmatpush2.msra.mxu0 0.0
        %1039 = vmatprep.subr.mxu0 0.0
        %1040 = vmatpush2.msra.mxu0 0.0
        %1041 = vmatprep.subr.mxu0 0.0
        %1042 = vmatpush2.msra.mxu0 0.0
        %1043 = vmatprep.subr.mxu0 0.0
        %1044 = vmatpush2.msra.mxu0 0.0
        %1045 = vmatprep.subr.mxu0 0.0
        %1046 = vmatpush2.msra.mxu0 0.0
        %1047 = vmatprep.subr.mxu0 0.0
        %1048 = vmatpush2.msra.mxu0 0.0
        %1049 = vmatprep.subr.mxu0 0.0
        %1050 = vmatpush2.msra.mxu0 0.0
        %1051 = vmatprep.subr.mxu0 0.0
        %1052 = vmatpush2.msra.mxu0 0.0
        %1053 = vmatprep.subr.mxu0 0.0
        %1054 = vmatpush2.msra.mxu0 0.0
        %1055 = vmatprep.subr.mxu0 0.0
        %1056 = vmatpush2.msra.mxu0 0.0
        %1057 = vmatprep.subr.mxu0 0.0
        %1058 = vmatpush2.msra.mxu0 0.0
        %1059 = vmatprep.subr.mxu0 0.0
        %1060 = vmatpush2.msra.mxu0 0.0
        %1061 = vmatprep.subr.mxu0 0.0
        %1062 = vmatpush2.msra.mxu0 0.0
        %1063 = vmatprep.subr.mxu0 0.0
        %1064 = vmatpush2.msra.mxu0 0.0
        %1065 = vmatprep.subr.mxu0 0.0
        %1066 = vmatpush2.msra.mxu0 0.0
        %1067 = vmatprep.mubr.f32.mxu0 0.0
        %1068 = vmatmul.mubr.f32.gmra.mxu0 %v754
        %v1069 = vpop.f32.mrf.mxu0
        %v1070 = vadd.f32 %v925, %v1069
        %v1071 = vpop.f32.mrf.mxu0
        %1072 = vmatprep.mubr.f32.mxu0 0.0
        %1073 = vmatmul.mubr.f32.gmra.mxu0 %v706
        %v1074 = vpop.f32.mrf.mxu0
        %v1075 = vadd.f32 %v930, %v1074
        %v1076 = vpop.f32.mrf.mxu0
        %1077 = vmatprep.mubr.f32.mxu0 0.0
        %1078 = vmatmul.mubr.f32.gmra.mxu0 %v755
        %v1079 = vpop.f32.mrf.mxu0
        %v1080 = vadd.f32 %v935, %v1079
        %v1081 = vpop.f32.mrf.mxu0
        %1082 = vmatprep.mubr.f32.mxu0 0.0
        %1083 = vmatmul.mubr.f32.gmra.mxu0 %v709
        %v1084 = vpop.f32.mrf.mxu0
        %v1085 = vadd.f32 %v940, %v1084
        %v1086 = vpop.f32.mrf.mxu0
        %1087 = vmatprep.mubr.f32.mxu0 0.0
        %1088 = vmatmul.mubr.f32.gmra.mxu0 %v756
        %v1089 = vpop.f32.mrf.mxu0
        %v1090 = vadd.f32 %v945, %v1089
        %v1091 = vpop.f32.mrf.mxu0
        %1092 = vmatprep.mubr.f32.mxu0 0.0
        %1093 = vmatmul.mubr.f32.gmra.mxu0 %v712
        %v1094 = vpop.f32.mrf.mxu0
        %v1095 = vadd.f32 %v950, %v1094
        %v1096 = vpop.f32.mrf.mxu0
        %1097 = vmatprep.mubr.f32.mxu0 0.0
        %1098 = vmatmul.mubr.f32.gmra.mxu0 %v757
        %v1099 = vpop.f32.mrf.mxu0
        %v1100 = vadd.f32 %v955, %v1099
        %v1101 = vpop.f32.mrf.mxu0
        %1102 = vmatprep.mubr.f32.mxu0 0.0
        %1103 = vmatmul.mubr.f32.gmra.mxu0 %v715
        %v1104 = vpop.f32.mrf.mxu0
        %v1105 = vadd.f32 %v960, %v1104
        %v1106 = vpop.f32.mrf.mxu0
        %1107 = vmatprep.mubr.f32.mxu0 0.0
        %1108 = vmatmul.mubr.f32.gmra.mxu0 %v758
        %v1109 = vpop.f32.mrf.mxu0
        %v1110 = vadd.f32 %v965, %v1109
        %v1111 = vpop.f32.mrf.mxu0
        %1112 = vmatprep.mubr.f32.mxu0 0.0
        %1113 = vmatmul.mubr.f32.gmra.mxu0 %v718
        %v1114 = vpop.f32.mrf.mxu0
        %v1115 = vadd.f32 %v970, %v1114
        %v1116 = vpop.f32.mrf.mxu0
        %1117 = vmatprep.mubr.f32.mxu0 0.0
        %1118 = vmatmul.mubr.f32.gmra.mxu0 %v759
        %v1119 = vpop.f32.mrf.mxu0
        %v1120 = vadd.f32 %v975, %v1119
        %v1121 = vpop.f32.mrf.mxu0
        %1122 = vmatprep.mubr.f32.mxu0 0.0
        %1123 = vmatmul.mubr.f32.gmra.mxu0 %v721
        %v1124 = vpop.f32.mrf.mxu0
        %v1125 = vadd.f32 %v980, %v1124
        %v1126 = vpop.f32.mrf.mxu0
        %1127 = vmatprep.mubr.f32.mxu0 0.0
        %1128 = vmatmul.mubr.f32.gmra.mxu0 %v760
        %v1129 = vpop.f32.mrf.mxu0
        %v1130 = vadd.f32 %v985, %v1129
        %v1131 = vpop.f32.mrf.mxu0
        %1132 = vmatprep.mubr.f32.mxu0 0.0
        %1133 = vmatmul.mubr.f32.gmra.mxu0 %v724
        %v1134 = vpop.f32.mrf.mxu0
        %v1135 = vadd.f32 %v990, %v1134
        %v1136 = vpop.f32.mrf.mxu0
        %1137 = vmatprep.mubr.f32.mxu0 0.0
        %1138 = vmatmul.mubr.f32.gmra.mxu0 %v761
        %v1139 = vpop.f32.mrf.mxu0
        %v1140 = vadd.f32 %v995, %v1139
        %v1141 = vpop.f32.mrf.mxu0
        %1142 = vmatprep.mubr.f32.mxu0 0.0
        %1143 = vmatmul.mubr.f32.gmra.mxu0 %v727
        %v1144 = vpop.f32.mrf.mxu0
        %v1145 = vadd.f32 %v1000, %v1144
        %v1146 = vpop.f32.mrf.mxu0
        %1147 = vdwg.mxu0
        %s1148 = scalar_lea.vmem [#allocation10], 256
        %v1149 = vld [vmem:[%s1148] sm:$0xff]
        %v1150 = vld [vmem:[%s1148 + $0x8] sm:$0xff]
        %v1151 = vld [vmem:[%s1148 + $0x10] sm:$0xff]
        %v1152 = vld [vmem:[%s1148 + $0x18] sm:$0xff]
        %v1153 = vld [vmem:[%s1148 + $0x20] sm:$0xff]
        %v1154 = vld [vmem:[%s1148 + $0x28] sm:$0xff]
        %v1155 = vld [vmem:[%s1148 + $0x30] sm:$0xff]
        %v1156 = vld [vmem:[%s1148 + $0x38] sm:$0xff]
        %v1157 = vld [vmem:[%s1148 + $0x40] sm:$0xff]
        %v1158 = vld [vmem:[%s1148 + $0x48] sm:$0xff]
        %v1159 = vld [vmem:[%s1148 + $0x50] sm:$0xff]
        %v1160 = vld [vmem:[%s1148 + $0x58] sm:$0xff]
        %v1161 = vld [vmem:[%s1148 + $0x60] sm:$0xff]
        %v1162 = vld [vmem:[%s1148 + $0x68] sm:$0xff]
        %v1163 = vld [vmem:[%s1148 + $0x70] sm:$0xff]
        %v1164 = vld [vmem:[%s1148 + $0x78] sm:$0xff]
        %1165 = vmatprep.subr.mxu0 0.0
        %1166 = vmatpush1.msra.mxu0 %v1164
        %1167 = vmatprep.subr.mxu0 0.0
        %1168 = vmatpush1.msra.mxu0 %v1163
        %1169 = vmatprep.subr.mxu0 0.0
        %1170 = vmatpush1.msra.mxu0 %v1162
        %1171 = vmatprep.subr.mxu0 0.0
        %1172 = vmatpush1.msra.mxu0 %v1161
        %1173 = vmatprep.subr.mxu0 0.0
        %1174 = vmatpush1.msra.mxu0 %v1160
        %1175 = vmatprep.subr.mxu0 0.0
        %1176 = vmatpush1.msra.mxu0 %v1159
        %1177 = vmatprep.subr.mxu0 0.0
        %1178 = vmatpush1.msra.mxu0 %v1158
        %1179 = vmatprep.subr.mxu0 0.0
        %1180 = vmatpush1.msra.mxu0 %v1157
        %1181 = vmatprep.subr.mxu0 0.0
        %1182 = vmatpush1.msra.mxu0 %v1156
        %1183 = vmatprep.subr.mxu0 0.0
        %1184 = vmatpush1.msra.mxu0 %v1155
        %1185 = vmatprep.subr.mxu0 0.0
        %1186 = vmatpush1.msra.mxu0 %v1154
        %1187 = vmatprep.subr.mxu0 0.0
        %1188 = vmatpush1.msra.mxu0 %v1153
        %1189 = vmatprep.subr.mxu0 0.0
        %1190 = vmatpush1.msra.mxu0 %v1152
        %1191 = vmatprep.subr.mxu0 0.0
        %1192 = vmatpush1.msra.mxu0 %v1151
        %1193 = vmatprep.subr.mxu0 0.0
        %1194 = vmatpush1.msra.mxu0 %v1150
        %1195 = vmatprep.subr.mxu0 0.0
        %1196 = vmatpush1.msra.mxu0 %v1149
        %1197 = vmatprep.subr.mxu0 0.0
        %1198 = vmatpush2.msra.mxu0 0.0
        %1199 = vmatprep.subr.mxu0 0.0
        %1200 = vmatpush2.msra.mxu0 0.0
        %1201 = vmatprep.subr.mxu0 0.0
        %1202 = vmatpush2.msra.mxu0 0.0
        %1203 = vmatprep.subr.mxu0 0.0
        %1204 = vmatpush2.msra.mxu0 0.0
        %1205 = vmatprep.subr.mxu0 0.0
        %1206 = vmatpush2.msra.mxu0 0.0
        %1207 = vmatprep.subr.mxu0 0.0
        %1208 = vmatpush2.msra.mxu0 0.0
        %1209 = vmatprep.subr.mxu0 0.0
        %1210 = vmatpush2.msra.mxu0 0.0
        %1211 = vmatprep.subr.mxu0 0.0
        %1212 = vmatpush2.msra.mxu0 0.0
        %1213 = vmatprep.subr.mxu0 0.0
        %1214 = vmatpush2.msra.mxu0 0.0
        %1215 = vmatprep.subr.mxu0 0.0
        %1216 = vmatpush2.msra.mxu0 0.0
        %1217 = vmatprep.subr.mxu0 0.0
        %1218 = vmatpush2.msra.mxu0 0.0
        %1219 = vmatprep.subr.mxu0 0.0
        %1220 = vmatpush2.msra.mxu0 0.0
        %1221 = vmatprep.subr.mxu0 0.0
        %1222 = vmatpush2.msra.mxu0 0.0
        %1223 = vmatprep.subr.mxu0 0.0
        %1224 = vmatpush2.msra.mxu0 0.0
        %1225 = vmatprep.subr.mxu0 0.0
        %1226 = vmatpush2.msra.mxu0 0.0
        %1227 = vmatprep.subr.mxu0 0.0
        %1228 = vmatpush2.msra.mxu0 0.0
        %1229 = vmatprep.mubr.f32.mxu0 0.0
        %1230 = vmatmul.mubr.f32.gmra.mxu0 %v767
        %v1231 = vpop.f32.mrf.mxu0
        %v1232 = vadd.f32 0.0, %v1231
        %v1233 = vpop.f32.mrf.mxu0
        %1234 = vmatprep.mubr.f32.mxu0 0.0
        %1235 = vmatmul.mubr.f32.gmra.mxu0 %v815
        %v1236 = vpop.f32.mrf.mxu0
        %v1237 = vadd.f32 0.0, %v1236
        %v1238 = vpop.f32.mrf.mxu0
        %1239 = vmatprep.mubr.f32.mxu0 0.0
        %1240 = vmatmul.mubr.f32.gmra.mxu0 %v770
        %v1241 = vpop.f32.mrf.mxu0
        %v1242 = vadd.f32 0.0, %v1241
        %v1243 = vpop.f32.mrf.mxu0
        %1244 = vmatprep.mubr.f32.mxu0 0.0
        %1245 = vmatmul.mubr.f32.gmra.mxu0 %v816
        %v1246 = vpop.f32.mrf.mxu0
        %v1247 = vadd.f32 0.0, %v1246
        %v1248 = vpop.f32.mrf.mxu0
        %1249 = vmatprep.mubr.f32.mxu0 0.0
        %1250 = vmatmul.mubr.f32.gmra.mxu0 %v773
        %v1251 = vpop.f32.mrf.mxu0
        %v1252 = vadd.f32 0.0, %v1251
        %v1253 = vpop.f32.mrf.mxu0
        %1254 = vmatprep.mubr.f32.mxu0 0.0
        %1255 = vmatmul.mubr.f32.gmra.mxu0 %v817
        %v1256 = vpop.f32.mrf.mxu0
        %v1257 = vadd.f32 0.0, %v1256
        %v1258 = vpop.f32.mrf.mxu0
        %1259 = vmatprep.mubr.f32.mxu0 0.0
        %1260 = vmatmul.mubr.f32.gmra.mxu0 %v776
        %v1261 = vpop.f32.mrf.mxu0
        %v1262 = vadd.f32 0.0, %v1261
        %v1263 = vpop.f32.mrf.mxu0
        %1264 = vmatprep.mubr.f32.mxu0 0.0
        %1265 = vmatmul.mubr.f32.gmra.mxu0 %v818
        %v1266 = vpop.f32.mrf.mxu0
        %v1267 = vadd.f32 0.0, %v1266
        %v1268 = vpop.f32.mrf.mxu0
        %1269 = vmatprep.mubr.f32.mxu0 0.0
        %1270 = vmatmul.mubr.f32.gmra.mxu0 %v779
        %v1271 = vpop.f32.mrf.mxu0
        %v1272 = vadd.f32 0.0, %v1271
        %v1273 = vpop.f32.mrf.mxu0
        %1274 = vmatprep.mubr.f32.mxu0 0.0
        %1275 = vmatmul.mubr.f32.gmra.mxu0 %v819
        %v1276 = vpop.f32.mrf.mxu0
        %v1277 = vadd.f32 0.0, %v1276
        %v1278 = vpop.f32.mrf.mxu0
        %1279 = vmatprep.mubr.f32.mxu0 0.0
        %1280 = vmatmul.mubr.f32.gmra.mxu0 %v782
        %v1281 = vpop.f32.mrf.mxu0
        %v1282 = vadd.f32 0.0, %v1281
        %v1283 = vpop.f32.mrf.mxu0
        %1284 = vmatprep.mubr.f32.mxu0 0.0
        %1285 = vmatmul.mubr.f32.gmra.mxu0 %v820
        %v1286 = vpop.f32.mrf.mxu0
        %v1287 = vadd.f32 0.0, %v1286
        %v1288 = vpop.f32.mrf.mxu0
        %1289 = vmatprep.mubr.f32.mxu0 0.0
        %1290 = vmatmul.mubr.f32.gmra.mxu0 %v785
        %v1291 = vpop.f32.mrf.mxu0
        %v1292 = vadd.f32 0.0, %v1291
        %v1293 = vpop.f32.mrf.mxu0
        %1294 = vmatprep.mubr.f32.mxu0 0.0
        %1295 = vmatmul.mubr.f32.gmra.mxu0 %v821
        %v1296 = vpop.f32.mrf.mxu0
        %v1297 = vadd.f32 0.0, %v1296
        %v1298 = vpop.f32.mrf.mxu0
        %1299 = vmatprep.mubr.f32.mxu0 0.0
        %1300 = vmatmul.mubr.f32.gmra.mxu0 %v788
        %v1301 = vpop.f32.mrf.mxu0
        %v1302 = vadd.f32 0.0, %v1301
        %v1303 = vpop.f32.mrf.mxu0
        %1304 = vmatprep.mubr.f32.mxu0 0.0
        %1305 = vmatmul.mubr.f32.gmra.mxu0 %v822
        %v1306 = vpop.f32.mrf.mxu0
        %v1307 = vadd.f32 0.0, %v1306
        %v1308 = vpop.f32.mrf.mxu0
        %1309 = vdwg.mxu0
        %v1310 = vadd.f32 %v1070, %v1232
        %v1311 = vadd.f32 %v1075, %v1237
        %v1312 = vadd.f32 %v1080, %v1242
        %v1313 = vadd.f32 %v1085, %v1247
        %v1314 = vadd.f32 %v1090, %v1252
        %v1315 = vadd.f32 %v1095, %v1257
        %v1316 = vadd.f32 %v1100, %v1262
        %v1317 = vadd.f32 %v1105, %v1267
        %v1318 = vadd.f32 %v1110, %v1272
        %v1319 = vadd.f32 %v1115, %v1277
        %v1320 = vadd.f32 %v1120, %v1282
        %v1321 = vadd.f32 %v1125, %v1287
        %v1322 = vadd.f32 %v1130, %v1292
        %v1323 = vadd.f32 %v1135, %v1297
        %v1324 = vadd.f32 %v1140, %v1302
        %v1325 = vadd.f32 %v1145, %v1307
        %s1326 = scalar_lea.vmem [#allocation10], 384
        %v1327 = vld [vmem:[%s1326] sm:$0xff]
        %v1328 = vld [vmem:[%s1326 + $0x8] sm:$0xff]
        %v1329 = vld [vmem:[%s1326 + $0x10] sm:$0xff]
        %v1330 = vld [vmem:[%s1326 + $0x18] sm:$0xff]
        %v1331 = vld [vmem:[%s1326 + $0x20] sm:$0xff]
        %v1332 = vld [vmem:[%s1326 + $0x28] sm:$0xff]
        %v1333 = vld [vmem:[%s1326 + $0x30] sm:$0xff]
        %v1334 = vld [vmem:[%s1326 + $0x38] sm:$0xff]
        %v1335 = vld [vmem:[%s1326 + $0x40] sm:$0xff]
        %v1336 = vld [vmem:[%s1326 + $0x48] sm:$0xff]
        %v1337 = vld [vmem:[%s1326 + $0x50] sm:$0xff]
        %v1338 = vld [vmem:[%s1326 + $0x58] sm:$0xff]
        %v1339 = vld [vmem:[%s1326 + $0x60] sm:$0xff]
        %v1340 = vld [vmem:[%s1326 + $0x68] sm:$0xff]
        %v1341 = vld [vmem:[%s1326 + $0x70] sm:$0xff]
        %v1342 = vld [vmem:[%s1326 + $0x78] sm:$0xff]
        %1343 = vmatprep.subr.mxu0 0.0
        %1344 = vmatpush1.msra.mxu0 %v1342
        %1345 = vmatprep.subr.mxu0 0.0
        %1346 = vmatpush1.msra.mxu0 %v1341
        %1347 = vmatprep.subr.mxu0 0.0
        %1348 = vmatpush1.msra.mxu0 %v1340
        %1349 = vmatprep.subr.mxu0 0.0
        %1350 = vmatpush1.msra.mxu0 %v1339
        %1351 = vmatprep.subr.mxu0 0.0
        %1352 = vmatpush1.msra.mxu0 %v1338
        %1353 = vmatprep.subr.mxu0 0.0
        %1354 = vmatpush1.msra.mxu0 %v1337
        %1355 = vmatprep.subr.mxu0 0.0
        %1356 = vmatpush1.msra.mxu0 %v1336
        %1357 = vmatprep.subr.mxu0 0.0
        %1358 = vmatpush1.msra.mxu0 %v1335
        %1359 = vmatprep.subr.mxu0 0.0
        %1360 = vmatpush1.msra.mxu0 %v1334
        %1361 = vmatprep.subr.mxu0 0.0
        %1362 = vmatpush1.msra.mxu0 %v1333
        %1363 = vmatprep.subr.mxu0 0.0
        %1364 = vmatpush1.msra.mxu0 %v1332
        %1365 = vmatprep.subr.mxu0 0.0
        %1366 = vmatpush1.msra.mxu0 %v1331
        %1367 = vmatprep.subr.mxu0 0.0
        %1368 = vmatpush1.msra.mxu0 %v1330
        %1369 = vmatprep.subr.mxu0 0.0
        %1370 = vmatpush1.msra.mxu0 %v1329
        %1371 = vmatprep.subr.mxu0 0.0
        %1372 = vmatpush1.msra.mxu0 %v1328
        %1373 = vmatprep.subr.mxu0 0.0
        %1374 = vmatpush1.msra.mxu0 %v1327
        %1375 = vmatprep.subr.mxu0 0.0
        %1376 = vmatpush2.msra.mxu0 0.0
        %1377 = vmatprep.subr.mxu0 0.0
        %1378 = vmatpush2.msra.mxu0 0.0
        %1379 = vmatprep.subr.mxu0 0.0
        %1380 = vmatpush2.msra.mxu0 0.0
        %1381 = vmatprep.subr.mxu0 0.0
        %1382 = vmatpush2.msra.mxu0 0.0
        %1383 = vmatprep.subr.mxu0 0.0
        %1384 = vmatpush2.msra.mxu0 0.0
        %1385 = vmatprep.subr.mxu0 0.0
        %1386 = vmatpush2.msra.mxu0 0.0
        %1387 = vmatprep.subr.mxu0 0.0
        %1388 = vmatpush2.msra.mxu0 0.0
        %1389 = vmatprep.subr.mxu0 0.0
        %1390 = vmatpush2.msra.mxu0 0.0
        %1391 = vmatprep.subr.mxu0 0.0
        %1392 = vmatpush2.msra.mxu0 0.0
        %1393 = vmatprep.subr.mxu0 0.0
        %1394 = vmatpush2.msra.mxu0 0.0
        %1395 = vmatprep.subr.mxu0 0.0
        %1396 = vmatpush2.msra.mxu0 0.0
        %1397 = vmatprep.subr.mxu0 0.0
        %1398 = vmatpush2.msra.mxu0 0.0
        %1399 = vmatprep.subr.mxu0 0.0
        %1400 = vmatpush2.msra.mxu0 0.0
        %1401 = vmatprep.subr.mxu0 0.0
        %1402 = vmatpush2.msra.mxu0 0.0
        %1403 = vmatprep.subr.mxu0 0.0
        %1404 = vmatpush2.msra.mxu0 0.0
        %1405 = vmatprep.subr.mxu0 0.0
        %1406 = vmatpush2.msra.mxu0 0.0
        %1407 = vmatprep.mubr.f32.mxu0 0.0
        %1408 = vmatmul.mubr.f32.gmra.mxu0 %v755
        %v1409 = vpop.f32.mrf.mxu0
        %v1410 = vadd.f32 0.0, %v1409
        %v1411 = vpop.f32.mrf.mxu0
        %1412 = vmatprep.mubr.f32.mxu0 0.0
        %1413 = vmatmul.mubr.f32.gmra.mxu0 %v709
        %v1414 = vpop.f32.mrf.mxu0
        %v1415 = vadd.f32 0.0, %v1414
        %v1416 = vpop.f32.mrf.mxu0
        %1417 = vmatprep.mubr.f32.mxu0 0.0
        %1418 = vmatmul.mubr.f32.gmra.mxu0 %v756
        %v1419 = vpop.f32.mrf.mxu0
        %v1420 = vadd.f32 0.0, %v1419
        %v1421 = vpop.f32.mrf.mxu0
        %1422 = vmatprep.mubr.f32.mxu0 0.0
        %1423 = vmatmul.mubr.f32.gmra.mxu0 %v712
        %v1424 = vpop.f32.mrf.mxu0
        %v1425 = vadd.f32 0.0, %v1424
        %v1426 = vpop.f32.mrf.mxu0
        %1427 = vmatprep.mubr.f32.mxu0 0.0
        %1428 = vmatmul.mubr.f32.gmra.mxu0 %v757
        %v1429 = vpop.f32.mrf.mxu0
        %v1430 = vadd.f32 0.0, %v1429
        %v1431 = vpop.f32.mrf.mxu0
        %1432 = vmatprep.mubr.f32.mxu0 0.0
        %1433 = vmatmul.mubr.f32.gmra.mxu0 %v715
        %v1434 = vpop.f32.mrf.mxu0
        %v1435 = vadd.f32 0.0, %v1434
        %v1436 = vpop.f32.mrf.mxu0
        %1437 = vmatprep.mubr.f32.mxu0 0.0
        %1438 = vmatmul.mubr.f32.gmra.mxu0 %v758
        %v1439 = vpop.f32.mrf.mxu0
        %v1440 = vadd.f32 0.0, %v1439
        %v1441 = vpop.f32.mrf.mxu0
        %1442 = vmatprep.mubr.f32.mxu0 0.0
        %1443 = vmatmul.mubr.f32.gmra.mxu0 %v718
        %v1444 = vpop.f32.mrf.mxu0
        %v1445 = vadd.f32 0.0, %v1444
        %v1446 = vpop.f32.mrf.mxu0
        %1447 = vmatprep.mubr.f32.mxu0 0.0
        %1448 = vmatmul.mubr.f32.gmra.mxu0 %v759
        %v1449 = vpop.f32.mrf.mxu0
        %v1450 = vadd.f32 0.0, %v1449
        %v1451 = vpop.f32.mrf.mxu0
        %1452 = vmatprep.mubr.f32.mxu0 0.0
        %1453 = vmatmul.mubr.f32.gmra.mxu0 %v721
        %v1454 = vpop.f32.mrf.mxu0
        %v1455 = vadd.f32 0.0, %v1454
        %v1456 = vpop.f32.mrf.mxu0
        %1457 = vmatprep.mubr.f32.mxu0 0.0
        %1458 = vmatmul.mubr.f32.gmra.mxu0 %v760
        %v1459 = vpop.f32.mrf.mxu0
        %v1460 = vadd.f32 0.0, %v1459
        %v1461 = vpop.f32.mrf.mxu0
        %1462 = vmatprep.mubr.f32.mxu0 0.0
        %1463 = vmatmul.mubr.f32.gmra.mxu0 %v724
        %v1464 = vpop.f32.mrf.mxu0
        %v1465 = vadd.f32 0.0, %v1464
        %v1466 = vpop.f32.mrf.mxu0
        %1467 = vmatprep.mubr.f32.mxu0 0.0
        %1468 = vmatmul.mubr.f32.gmra.mxu0 %v761
        %v1469 = vpop.f32.mrf.mxu0
        %v1470 = vadd.f32 0.0, %v1469
        %v1471 = vpop.f32.mrf.mxu0
        %1472 = vmatprep.mubr.f32.mxu0 0.0
        %1473 = vmatmul.mubr.f32.gmra.mxu0 %v727
        %v1474 = vpop.f32.mrf.mxu0
        %v1475 = vadd.f32 0.0, %v1474
        %v1476 = vpop.f32.mrf.mxu0
        %1477 = vmatprep.mubr.f32.mxu0 0.0
        %1478 = vmatmul.mubr.f32.gmra.mxu0 %v762
        %v1479 = vpop.f32.mrf.mxu0
        %v1480 = vadd.f32 0.0, %v1479
        %v1481 = vpop.f32.mrf.mxu0
        %1482 = vmatprep.mubr.f32.mxu0 0.0
        %1483 = vmatmul.mubr.f32.gmra.mxu0 %v730
        %v1484 = vpop.f32.mrf.mxu0
        %v1485 = vadd.f32 0.0, %v1484
        %v1486 = vpop.f32.mrf.mxu0
        %1487 = vdwg.mxu0
        %v1488 = vadd.f32 %v1310, %v1410
        %v1489 = vadd.f32 %v1311, %v1415
        %v1490 = vadd.f32 %v1312, %v1420
        %v1491 = vadd.f32 %v1313, %v1425
        %v1492 = vadd.f32 %v1314, %v1430
        %v1493 = vadd.f32 %v1315, %v1435
        %v1494 = vadd.f32 %v1316, %v1440
        %v1495 = vadd.f32 %v1317, %v1445
        %v1496 = vadd.f32 %v1318, %v1450
        %v1497 = vadd.f32 %v1319, %v1455
        %v1498 = vadd.f32 %v1320, %v1460
        %v1499 = vadd.f32 %v1321, %v1465
        %v1500 = vadd.f32 %v1322, %v1470
        %v1501 = vadd.f32 %v1323, %v1475
        %v1502 = vadd.f32 %v1324, %v1480
        %v1503 = vadd.f32 %v1325, %v1485
        %s1504 = scalar_lea.vmem [#allocation10], 512
        %v1505 = vld [vmem:[%s1504] sm:$0xff]
        %v1506 = vld [vmem:[%s1504 + $0x8] sm:$0xff]
        %v1507 = vld [vmem:[%s1504 + $0x10] sm:$0xff]
        %v1508 = vld [vmem:[%s1504 + $0x18] sm:$0xff]
        %v1509 = vld [vmem:[%s1504 + $0x20] sm:$0xff]
        %v1510 = vld [vmem:[%s1504 + $0x28] sm:$0xff]
        %v1511 = vld [vmem:[%s1504 + $0x30] sm:$0xff]
        %v1512 = vld [vmem:[%s1504 + $0x38] sm:$0xff]
        %v1513 = vld [vmem:[%s1504 + $0x40] sm:$0xff]
        %v1514 = vld [vmem:[%s1504 + $0x48] sm:$0xff]
        %v1515 = vld [vmem:[%s1504 + $0x50] sm:$0xff]
        %v1516 = vld [vmem:[%s1504 + $0x58] sm:$0xff]
        %v1517 = vld [vmem:[%s1504 + $0x60] sm:$0xff]
        %v1518 = vld [vmem:[%s1504 + $0x68] sm:$0xff]
        %v1519 = vld [vmem:[%s1504 + $0x70] sm:$0xff]
        %v1520 = vld [vmem:[%s1504 + $0x78] sm:$0xff]
        %1521 = vmatprep.subr.mxu0 0.0
        %1522 = vmatpush1.msra.mxu0 %v1520
        %1523 = vmatprep.subr.mxu0 0.0
        %1524 = vmatpush1.msra.mxu0 %v1519
        %1525 = vmatprep.subr.mxu0 0.0
        %1526 = vmatpush1.msra.mxu0 %v1518
        %1527 = vmatprep.subr.mxu0 0.0
        %1528 = vmatpush1.msra.mxu0 %v1517
        %1529 = vmatprep.subr.mxu0 0.0
        %1530 = vmatpush1.msra.mxu0 %v1516
        %1531 = vmatprep.subr.mxu0 0.0
        %1532 = vmatpush1.msra.mxu0 %v1515
        %1533 = vmatprep.subr.mxu0 0.0
        %1534 = vmatpush1.msra.mxu0 %v1514
        %1535 = vmatprep.subr.mxu0 0.0
        %1536 = vmatpush1.msra.mxu0 %v1513
        %1537 = vmatprep.subr.mxu0 0.0
        %1538 = vmatpush1.msra.mxu0 %v1512
        %1539 = vmatprep.subr.mxu0 0.0
        %1540 = vmatpush1.msra.mxu0 %v1511
        %1541 = vmatprep.subr.mxu0 0.0
        %1542 = vmatpush1.msra.mxu0 %v1510
        %1543 = vmatprep.subr.mxu0 0.0
        %1544 = vmatpush1.msra.mxu0 %v1509
        %1545 = vmatprep.subr.mxu0 0.0
        %1546 = vmatpush1.msra.mxu0 %v1508
        %1547 = vmatprep.subr.mxu0 0.0
        %1548 = vmatpush1.msra.mxu0 %v1507
        %1549 = vmatprep.subr.mxu0 0.0
        %1550 = vmatpush1.msra.mxu0 %v1506
        %1551 = vmatprep.subr.mxu0 0.0
        %1552 = vmatpush1.msra.mxu0 %v1505
        %1553 = vmatprep.subr.mxu0 0.0
        %1554 = vmatpush2.msra.mxu0 0.0
        %1555 = vmatprep.subr.mxu0 0.0
        %1556 = vmatpush2.msra.mxu0 0.0
        %1557 = vmatprep.subr.mxu0 0.0
        %1558 = vmatpush2.msra.mxu0 0.0
        %1559 = vmatprep.subr.mxu0 0.0
        %1560 = vmatpush2.msra.mxu0 0.0
        %1561 = vmatprep.subr.mxu0 0.0
        %1562 = vmatpush2.msra.mxu0 0.0
        %1563 = vmatprep.subr.mxu0 0.0
        %1564 = vmatpush2.msra.mxu0 0.0
        %1565 = vmatprep.subr.mxu0 0.0
        %1566 = vmatpush2.msra.mxu0 0.0
        %1567 = vmatprep.subr.mxu0 0.0
        %1568 = vmatpush2.msra.mxu0 0.0
        %1569 = vmatprep.subr.mxu0 0.0
        %1570 = vmatpush2.msra.mxu0 0.0
        %1571 = vmatprep.subr.mxu0 0.0
        %1572 = vmatpush2.msra.mxu0 0.0
        %1573 = vmatprep.subr.mxu0 0.0
        %1574 = vmatpush2.msra.mxu0 0.0
        %1575 = vmatprep.subr.mxu0 0.0
        %1576 = vmatpush2.msra.mxu0 0.0
        %1577 = vmatprep.subr.mxu0 0.0
        %1578 = vmatpush2.msra.mxu0 0.0
        %1579 = vmatprep.subr.mxu0 0.0
        %1580 = vmatpush2.msra.mxu0 0.0
        %1581 = vmatprep.subr.mxu0 0.0
        %1582 = vmatpush2.msra.mxu0 0.0
        %1583 = vmatprep.subr.mxu0 0.0
        %1584 = vmatpush2.msra.mxu0 0.0
        %1585 = vmatprep.mubr.f32.mxu0 0.0
        %1586 = vmatmul.mubr.f32.gmra.mxu0 %v665
        %v1587 = vpop.f32.mrf.mxu0
        %v1588 = vadd.f32 0.0, %v1587
        %v1589 = vpop.f32.mrf.mxu0
        %1590 = vmatprep.mubr.f32.mxu0 0.0
        %1591 = vmatmul.mubr.f32.gmra.mxu0 %v666
        %v1592 = vpop.f32.mrf.mxu0
        %v1593 = vadd.f32 0.0, %v1592
        %v1594 = vpop.f32.mrf.mxu0
        %1595 = vmatprep.mubr.f32.mxu0 0.0
        %1596 = vmatmul.mubr.f32.gmra.mxu0 %v667
        %v1597 = vpop.f32.mrf.mxu0
        %v1598 = vadd.f32 0.0, %v1597
        %v1599 = vpop.f32.mrf.mxu0
        %1600 = vmatprep.mubr.f32.mxu0 0.0
        %1601 = vmatmul.mubr.f32.gmra.mxu0 %v668
        %v1602 = vpop.f32.mrf.mxu0
        %v1603 = vadd.f32 0.0, %v1602
        %v1604 = vpop.f32.mrf.mxu0
        %1605 = vmatprep.mubr.f32.mxu0 0.0
        %1606 = vmatmul.mubr.f32.gmra.mxu0 %v669
        %v1607 = vpop.f32.mrf.mxu0
        %v1608 = vadd.f32 0.0, %v1607
        %v1609 = vpop.f32.mrf.mxu0
        %1610 = vmatprep.mubr.f32.mxu0 0.0
        %1611 = vmatmul.mubr.f32.gmra.mxu0 %v670
        %v1612 = vpop.f32.mrf.mxu0
        %v1613 = vadd.f32 0.0, %v1612
        %v1614 = vpop.f32.mrf.mxu0
        %1615 = vmatprep.mubr.f32.mxu0 0.0
        %1616 = vmatmul.mubr.f32.gmra.mxu0 %v671
        %v1617 = vpop.f32.mrf.mxu0
        %v1618 = vadd.f32 0.0, %v1617
        %v1619 = vpop.f32.mrf.mxu0
        %1620 = vmatprep.mubr.f32.mxu0 0.0
        %1621 = vmatmul.mubr.f32.gmra.mxu0 %v672
        %v1622 = vpop.f32.mrf.mxu0
        %v1623 = vadd.f32 0.0, %v1622
        %v1624 = vpop.f32.mrf.mxu0
        %1625 = vmatprep.mubr.f32.mxu0 0.0
        %1626 = vmatmul.mubr.f32.gmra.mxu0 %v673
        %v1627 = vpop.f32.mrf.mxu0
        %v1628 = vadd.f32 0.0, %v1627
        %v1629 = vpop.f32.mrf.mxu0
        %1630 = vmatprep.mubr.f32.mxu0 0.0
        %1631 = vmatmul.mubr.f32.gmra.mxu0 %v674
        %v1632 = vpop.f32.mrf.mxu0
        %v1633 = vadd.f32 0.0, %v1632
        %v1634 = vpop.f32.mrf.mxu0
        %1635 = vmatprep.mubr.f32.mxu0 0.0
        %1636 = vmatmul.mubr.f32.gmra.mxu0 %v675
        %v1637 = vpop.f32.mrf.mxu0
        %v1638 = vadd.f32 0.0, %v1637
        %v1639 = vpop.f32.mrf.mxu0
        %1640 = vmatprep.mubr.f32.mxu0 0.0
        %1641 = vmatmul.mubr.f32.gmra.mxu0 %v676
        %v1642 = vpop.f32.mrf.mxu0
        %v1643 = vadd.f32 0.0, %v1642
        %v1644 = vpop.f32.mrf.mxu0
        %1645 = vmatprep.mubr.f32.mxu0 0.0
        %1646 = vmatmul.mubr.f32.gmra.mxu0 %v677
        %v1647 = vpop.f32.mrf.mxu0
        %v1648 = vadd.f32 0.0, %v1647
        %v1649 = vpop.f32.mrf.mxu0
        %1650 = vmatprep.mubr.f32.mxu0 0.0
        %1651 = vmatmul.mubr.f32.gmra.mxu0 %v678
        %v1652 = vpop.f32.mrf.mxu0
        %v1653 = vadd.f32 0.0, %v1652
        %v1654 = vpop.f32.mrf.mxu0
        %1655 = vmatprep.mubr.f32.mxu0 0.0
        %1656 = vmatmul.mubr.f32.gmra.mxu0 %v679
        %v1657 = vpop.f32.mrf.mxu0
        %v1658 = vadd.f32 0.0, %v1657
        %v1659 = vpop.f32.mrf.mxu0
        %1660 = vmatprep.mubr.f32.mxu0 0.0
        %1661 = vmatmul.mubr.f32.gmra.mxu0 %v680
        %v1662 = vpop.f32.mrf.mxu0
        %v1663 = vadd.f32 0.0, %v1662
        %v1664 = vpop.f32.mrf.mxu0
        %1665 = vdwg.mxu0
        %v1666 = vadd.f32 %v1488, %v1588
        %v1667 = vadd.f32 %v1489, %v1593
        %v1668 = vadd.f32 %v1490, %v1598
        %v1669 = vadd.f32 %v1491, %v1603
        %v1670 = vadd.f32 %v1492, %v1608
        %v1671 = vadd.f32 %v1493, %v1613
        %v1672 = vadd.f32 %v1494, %v1618
        %v1673 = vadd.f32 %v1495, %v1623
        %v1674 = vadd.f32 %v1496, %v1628
        %v1675 = vadd.f32 %v1497, %v1633
        %v1676 = vadd.f32 %v1498, %v1638
        %v1677 = vadd.f32 %v1499, %v1643
        %v1678 = vadd.f32 %v1500, %v1648
        %v1679 = vadd.f32 %v1501, %v1653
        %v1680 = vadd.f32 %v1502, %v1658
        %v1681 = vadd.f32 %v1503, %v1663
        %s1682 = scalar_lea.vmem [#allocation10], 640
        %v1683 = vld [vmem:[%s1682] sm:$0xff]
        %v1684 = vld [vmem:[%s1682 + $0x8] sm:$0xff]
        %v1685 = vld [vmem:[%s1682 + $0x10] sm:$0xff]
        %v1686 = vld [vmem:[%s1682 + $0x18] sm:$0xff]
        %v1687 = vld [vmem:[%s1682 + $0x20] sm:$0xff]
        %v1688 = vld [vmem:[%s1682 + $0x28] sm:$0xff]
        %v1689 = vld [vmem:[%s1682 + $0x30] sm:$0xff]
        %v1690 = vld [vmem:[%s1682 + $0x38] sm:$0xff]
        %v1691 = vld [vmem:[%s1682 + $0x40] sm:$0xff]
        %v1692 = vld [vmem:[%s1682 + $0x48] sm:$0xff]
        %v1693 = vld [vmem:[%s1682 + $0x50] sm:$0xff]
        %v1694 = vld [vmem:[%s1682 + $0x58] sm:$0xff]
        %v1695 = vld [vmem:[%s1682 + $0x60] sm:$0xff]
        %v1696 = vld [vmem:[%s1682 + $0x68] sm:$0xff]
        %v1697 = vld [vmem:[%s1682 + $0x70] sm:$0xff]
        %v1698 = vld [vmem:[%s1682 + $0x78] sm:$0xff]
        %1699 = vmatprep.subr.mxu0 0.0
        %1700 = vmatpush1.msra.mxu0 %v1698
        %1701 = vmatprep.subr.mxu0 0.0
        %1702 = vmatpush1.msra.mxu0 %v1697
        %1703 = vmatprep.subr.mxu0 0.0
        %1704 = vmatpush1.msra.mxu0 %v1696
        %1705 = vmatprep.subr.mxu0 0.0
        %1706 = vmatpush1.msra.mxu0 %v1695
        %1707 = vmatprep.subr.mxu0 0.0
        %1708 = vmatpush1.msra.mxu0 %v1694
        %1709 = vmatprep.subr.mxu0 0.0
        %1710 = vmatpush1.msra.mxu0 %v1693
        %1711 = vmatprep.subr.mxu0 0.0
        %1712 = vmatpush1.msra.mxu0 %v1692
        %1713 = vmatprep.subr.mxu0 0.0
        %1714 = vmatpush1.msra.mxu0 %v1691
        %1715 = vmatprep.subr.mxu0 0.0
        %1716 = vmatpush1.msra.mxu0 %v1690
        %1717 = vmatprep.subr.mxu0 0.0
        %1718 = vmatpush1.msra.mxu0 %v1689
        %1719 = vmatprep.subr.mxu0 0.0
        %1720 = vmatpush1.msra.mxu0 %v1688
        %1721 = vmatprep.subr.mxu0 0.0
        %1722 = vmatpush1.msra.mxu0 %v1687
        %1723 = vmatprep.subr.mxu0 0.0
        %1724 = vmatpush1.msra.mxu0 %v1686
        %1725 = vmatprep.subr.mxu0 0.0
        %1726 = vmatpush1.msra.mxu0 %v1685
        %1727 = vmatprep.subr.mxu0 0.0
        %1728 = vmatpush1.msra.mxu0 %v1684
        %1729 = vmatprep.subr.mxu0 0.0
        %1730 = vmatpush1.msra.mxu0 %v1683
        %1731 = vmatprep.subr.mxu0 0.0
        %1732 = vmatpush2.msra.mxu0 0.0
        %1733 = vmatprep.subr.mxu0 0.0
        %1734 = vmatpush2.msra.mxu0 0.0
        %1735 = vmatprep.subr.mxu0 0.0
        %1736 = vmatpush2.msra.mxu0 0.0
        %1737 = vmatprep.subr.mxu0 0.0
        %1738 = vmatpush2.msra.mxu0 0.0
        %1739 = vmatprep.subr.mxu0 0.0
        %1740 = vmatpush2.msra.mxu0 0.0
        %1741 = vmatprep.subr.mxu0 0.0
        %1742 = vmatpush2.msra.mxu0 0.0
        %1743 = vmatprep.subr.mxu0 0.0
        %1744 = vmatpush2.msra.mxu0 0.0
        %1745 = vmatprep.subr.mxu0 0.0
        %1746 = vmatpush2.msra.mxu0 0.0
        %1747 = vmatprep.subr.mxu0 0.0
        %1748 = vmatpush2.msra.mxu0 0.0
        %1749 = vmatprep.subr.mxu0 0.0
        %1750 = vmatpush2.msra.mxu0 0.0
        %1751 = vmatprep.subr.mxu0 0.0
        %1752 = vmatpush2.msra.mxu0 0.0
        %1753 = vmatprep.subr.mxu0 0.0
        %1754 = vmatpush2.msra.mxu0 0.0
        %1755 = vmatprep.subr.mxu0 0.0
        %1756 = vmatpush2.msra.mxu0 0.0
        %1757 = vmatprep.subr.mxu0 0.0
        %1758 = vmatpush2.msra.mxu0 0.0
        %1759 = vmatprep.subr.mxu0 0.0
        %1760 = vmatpush2.msra.mxu0 0.0
        %1761 = vmatprep.subr.mxu0 0.0
        %1762 = vmatpush2.msra.mxu0 0.0
        %1763 = vmatprep.mubr.f32.mxu0 0.0
        %1764 = vmatmul.mubr.f32.gmra.mxu0 %v770
        %v1765 = vpop.f32.mrf.mxu0
        %v1766 = vadd.f32 0.0, %v1765
        %v1767 = vpop.f32.mrf.mxu0
        %1768 = vmatprep.mubr.f32.mxu0 0.0
        %1769 = vmatmul.mubr.f32.gmra.mxu0 %v816
        %v1770 = vpop.f32.mrf.mxu0
        %v1771 = vadd.f32 0.0, %v1770
        %v1772 = vpop.f32.mrf.mxu0
        %1773 = vmatprep.mubr.f32.mxu0 0.0
        %1774 = vmatmul.mubr.f32.gmra.mxu0 %v773
        %v1775 = vpop.f32.mrf.mxu0
        %v1776 = vadd.f32 0.0, %v1775
        %v1777 = vpop.f32.mrf.mxu0
        %1778 = vmatprep.mubr.f32.mxu0 0.0
        %1779 = vmatmul.mubr.f32.gmra.mxu0 %v817
        %v1780 = vpop.f32.mrf.mxu0
        %v1781 = vadd.f32 0.0, %v1780
        %v1782 = vpop.f32.mrf.mxu0
        %1783 = vmatprep.mubr.f32.mxu0 0.0
        %1784 = vmatmul.mubr.f32.gmra.mxu0 %v776
        %v1785 = vpop.f32.mrf.mxu0
        %v1786 = vadd.f32 0.0, %v1785
        %v1787 = vpop.f32.mrf.mxu0
        %1788 = vmatprep.mubr.f32.mxu0 0.0
        %1789 = vmatmul.mubr.f32.gmra.mxu0 %v818
        %v1790 = vpop.f32.mrf.mxu0
        %v1791 = vadd.f32 0.0, %v1790
        %v1792 = vpop.f32.mrf.mxu0
        %1793 = vmatprep.mubr.f32.mxu0 0.0
        %1794 = vmatmul.mubr.f32.gmra.mxu0 %v779
        %v1795 = vpop.f32.mrf.mxu0
        %v1796 = vadd.f32 0.0, %v1795
        %v1797 = vpop.f32.mrf.mxu0
        %1798 = vmatprep.mubr.f32.mxu0 0.0
        %1799 = vmatmul.mubr.f32.gmra.mxu0 %v819
        %v1800 = vpop.f32.mrf.mxu0
        %v1801 = vadd.f32 0.0, %v1800
        %v1802 = vpop.f32.mrf.mxu0
        %1803 = vmatprep.mubr.f32.mxu0 0.0
        %1804 = vmatmul.mubr.f32.gmra.mxu0 %v782
        %v1805 = vpop.f32.mrf.mxu0
        %v1806 = vadd.f32 0.0, %v1805
        %v1807 = vpop.f32.mrf.mxu0
        %1808 = vmatprep.mubr.f32.mxu0 0.0
        %1809 = vmatmul.mubr.f32.gmra.mxu0 %v820
        %v1810 = vpop.f32.mrf.mxu0
        %v1811 = vadd.f32 0.0, %v1810
        %v1812 = vpop.f32.mrf.mxu0
        %1813 = vmatprep.mubr.f32.mxu0 0.0
        %1814 = vmatmul.mubr.f32.gmra.mxu0 %v785
        %v1815 = vpop.f32.mrf.mxu0
        %v1816 = vadd.f32 0.0, %v1815
        %v1817 = vpop.f32.mrf.mxu0
        %1818 = vmatprep.mubr.f32.mxu0 0.0
        %1819 = vmatmul.mubr.f32.gmra.mxu0 %v821
        %v1820 = vpop.f32.mrf.mxu0
        %v1821 = vadd.f32 0.0, %v1820
        %v1822 = vpop.f32.mrf.mxu0
        %1823 = vmatprep.mubr.f32.mxu0 0.0
        %1824 = vmatmul.mubr.f32.gmra.mxu0 %v788
        %v1825 = vpop.f32.mrf.mxu0
        %v1826 = vadd.f32 0.0, %v1825
        %v1827 = vpop.f32.mrf.mxu0
        %1828 = vmatprep.mubr.f32.mxu0 0.0
        %1829 = vmatmul.mubr.f32.gmra.mxu0 %v822
        %v1830 = vpop.f32.mrf.mxu0
        %v1831 = vadd.f32 0.0, %v1830
        %v1832 = vpop.f32.mrf.mxu0
        %1833 = vmatprep.mubr.f32.mxu0 0.0
        %1834 = vmatmul.mubr.f32.gmra.mxu0 %v791
        %v1835 = vpop.f32.mrf.mxu0
        %v1836 = vadd.f32 0.0, %v1835
        %v1837 = vpop.f32.mrf.mxu0
        %1838 = vmatprep.mubr.f32.mxu0 0.0
        %1839 = vmatmul.mubr.f32.gmra.mxu0 %v823
        %v1840 = vpop.f32.mrf.mxu0
        %v1841 = vadd.f32 0.0, %v1840
        %v1842 = vpop.f32.mrf.mxu0
        %1843 = vdwg.mxu0
        %v1844 = vadd.f32 %v1666, %v1766
        %v1845 = vadd.f32 %v1667, %v1771
        %v1846 = vadd.f32 %v1668, %v1776
        %v1847 = vadd.f32 %v1669, %v1781
        %v1848 = vadd.f32 %v1670, %v1786
        %v1849 = vadd.f32 %v1671, %v1791
        %v1850 = vadd.f32 %v1672, %v1796
        %v1851 = vadd.f32 %v1673, %v1801
        %v1852 = vadd.f32 %v1674, %v1806
        %v1853 = vadd.f32 %v1675, %v1811
        %v1854 = vadd.f32 %v1676, %v1816
        %v1855 = vadd.f32 %v1677, %v1821
        %v1856 = vadd.f32 %v1678, %v1826
        %v1857 = vadd.f32 %v1679, %v1831
        %v1858 = vadd.f32 %v1680, %v1836
        %v1859 = vadd.f32 %v1681, %v1841
        %s1860 = scalar_lea.vmem [#allocation10], 768
        %v1861 = vld [vmem:[%s1860] sm:$0xff]
        %v1862 = vld [vmem:[%s1860 + $0x8] sm:$0xff]
        %v1863 = vld [vmem:[%s1860 + $0x10] sm:$0xff]
        %v1864 = vld [vmem:[%s1860 + $0x18] sm:$0xff]
        %v1865 = vld [vmem:[%s1860 + $0x20] sm:$0xff]
        %v1866 = vld [vmem:[%s1860 + $0x28] sm:$0xff]
        %v1867 = vld [vmem:[%s1860 + $0x30] sm:$0xff]
        %v1868 = vld [vmem:[%s1860 + $0x38] sm:$0xff]
        %v1869 = vld [vmem:[%s1860 + $0x40] sm:$0xff]
        %v1870 = vld [vmem:[%s1860 + $0x48] sm:$0xff]
        %v1871 = vld [vmem:[%s1860 + $0x50] sm:$0xff]
        %v1872 = vld [vmem:[%s1860 + $0x58] sm:$0xff]
        %v1873 = vld [vmem:[%s1860 + $0x60] sm:$0xff]
        %v1874 = vld [vmem:[%s1860 + $0x68] sm:$0xff]
        %v1875 = vld [vmem:[%s1860 + $0x70] sm:$0xff]
        %v1876 = vld [vmem:[%s1860 + $0x78] sm:$0xff]
        %1877 = vmatprep.subr.mxu0 0.0
        %1878 = vmatpush1.msra.mxu0 %v1876
        %1879 = vmatprep.subr.mxu0 0.0
        %1880 = vmatpush1.msra.mxu0 %v1875
        %1881 = vmatprep.subr.mxu0 0.0
        %1882 = vmatpush1.msra.mxu0 %v1874
        %1883 = vmatprep.subr.mxu0 0.0
        %1884 = vmatpush1.msra.mxu0 %v1873
        %1885 = vmatprep.subr.mxu0 0.0
        %1886 = vmatpush1.msra.mxu0 %v1872
        %1887 = vmatprep.subr.mxu0 0.0
        %1888 = vmatpush1.msra.mxu0 %v1871
        %1889 = vmatprep.subr.mxu0 0.0
        %1890 = vmatpush1.msra.mxu0 %v1870
        %1891 = vmatprep.subr.mxu0 0.0
        %1892 = vmatpush1.msra.mxu0 %v1869
        %1893 = vmatprep.subr.mxu0 0.0
        %1894 = vmatpush1.msra.mxu0 %v1868
        %1895 = vmatprep.subr.mxu0 0.0
        %1896 = vmatpush1.msra.mxu0 %v1867
        %1897 = vmatprep.subr.mxu0 0.0
        %1898 = vmatpush1.msra.mxu0 %v1866
        %1899 = vmatprep.subr.mxu0 0.0
        %1900 = vmatpush1.msra.mxu0 %v1865
        %1901 = vmatprep.subr.mxu0 0.0
        %1902 = vmatpush1.msra.mxu0 %v1864
        %1903 = vmatprep.subr.mxu0 0.0
        %1904 = vmatpush1.msra.mxu0 %v1863
        %1905 = vmatprep.subr.mxu0 0.0
        %1906 = vmatpush1.msra.mxu0 %v1862
        %1907 = vmatprep.subr.mxu0 0.0
        %1908 = vmatpush1.msra.mxu0 %v1861
        %1909 = vmatprep.subr.mxu0 0.0
        %1910 = vmatpush2.msra.mxu0 0.0
        %1911 = vmatprep.subr.mxu0 0.0
        %1912 = vmatpush2.msra.mxu0 0.0
        %1913 = vmatprep.subr.mxu0 0.0
        %1914 = vmatpush2.msra.mxu0 0.0
        %1915 = vmatprep.subr.mxu0 0.0
        %1916 = vmatpush2.msra.mxu0 0.0
        %1917 = vmatprep.subr.mxu0 0.0
        %1918 = vmatpush2.msra.mxu0 0.0
        %1919 = vmatprep.subr.mxu0 0.0
        %1920 = vmatpush2.msra.mxu0 0.0
        %1921 = vmatprep.subr.mxu0 0.0
        %1922 = vmatpush2.msra.mxu0 0.0
        %1923 = vmatprep.subr.mxu0 0.0
        %1924 = vmatpush2.msra.mxu0 0.0
        %1925 = vmatprep.subr.mxu0 0.0
        %1926 = vmatpush2.msra.mxu0 0.0
        %1927 = vmatprep.subr.mxu0 0.0
        %1928 = vmatpush2.msra.mxu0 0.0
        %1929 = vmatprep.subr.mxu0 0.0
        %1930 = vmatpush2.msra.mxu0 0.0
        %1931 = vmatprep.subr.mxu0 0.0
        %1932 = vmatpush2.msra.mxu0 0.0
        %1933 = vmatprep.subr.mxu0 0.0
        %1934 = vmatpush2.msra.mxu0 0.0
        %1935 = vmatprep.subr.mxu0 0.0
        %1936 = vmatpush2.msra.mxu0 0.0
        %1937 = vmatprep.subr.mxu0 0.0
        %1938 = vmatpush2.msra.mxu0 0.0
        %1939 = vmatprep.subr.mxu0 0.0
        %1940 = vmatpush2.msra.mxu0 0.0
        %1941 = vmatprep.mubr.f32.mxu0 0.0
        %1942 = vmatmul.mubr.f32.gmra.mxu0 %v756
        %v1943 = vpop.f32.mrf.mxu0
        %v1944 = vadd.f32 0.0, %v1943
        %v1945 = vpop.f32.mrf.mxu0
        %1946 = vmatprep.mubr.f32.mxu0 0.0
        %1947 = vmatmul.mubr.f32.gmra.mxu0 %v712
        %v1948 = vpop.f32.mrf.mxu0
        %v1949 = vadd.f32 0.0, %v1948
        %v1950 = vpop.f32.mrf.mxu0
        %1951 = vmatprep.mubr.f32.mxu0 0.0
        %1952 = vmatmul.mubr.f32.gmra.mxu0 %v757
        %v1953 = vpop.f32.mrf.mxu0
        %v1954 = vadd.f32 0.0, %v1953
        %v1955 = vpop.f32.mrf.mxu0
        %1956 = vmatprep.mubr.f32.mxu0 0.0
        %1957 = vmatmul.mubr.f32.gmra.mxu0 %v715
        %v1958 = vpop.f32.mrf.mxu0
        %v1959 = vadd.f32 0.0, %v1958
        %v1960 = vpop.f32.mrf.mxu0
        %1961 = vmatprep.mubr.f32.mxu0 0.0
        %1962 = vmatmul.mubr.f32.gmra.mxu0 %v758
        %v1963 = vpop.f32.mrf.mxu0
        %v1964 = vadd.f32 0.0, %v1963
        %v1965 = vpop.f32.mrf.mxu0
        %1966 = vmatprep.mubr.f32.mxu0 0.0
        %1967 = vmatmul.mubr.f32.gmra.mxu0 %v718
        %v1968 = vpop.f32.mrf.mxu0
        %v1969 = vadd.f32 0.0, %v1968
        %v1970 = vpop.f32.mrf.mxu0
        %1971 = vmatprep.mubr.f32.mxu0 0.0
        %1972 = vmatmul.mubr.f32.gmra.mxu0 %v759
        %v1973 = vpop.f32.mrf.mxu0
        %v1974 = vadd.f32 0.0, %v1973
        %v1975 = vpop.f32.mrf.mxu0
        %1976 = vmatprep.mubr.f32.mxu0 0.0
        %1977 = vmatmul.mubr.f32.gmra.mxu0 %v721
        %v1978 = vpop.f32.mrf.mxu0
        %v1979 = vadd.f32 0.0, %v1978
        %v1980 = vpop.f32.mrf.mxu0
        %1981 = vmatprep.mubr.f32.mxu0 0.0
        %1982 = vmatmul.mubr.f32.gmra.mxu0 %v760
        %v1983 = vpop.f32.mrf.mxu0
        %v1984 = vadd.f32 0.0, %v1983
        %v1985 = vpop.f32.mrf.mxu0
        %1986 = vmatprep.mubr.f32.mxu0 0.0
        %1987 = vmatmul.mubr.f32.gmra.mxu0 %v724
        %v1988 = vpop.f32.mrf.mxu0
        %v1989 = vadd.f32 0.0, %v1988
        %v1990 = vpop.f32.mrf.mxu0
        %1991 = vmatprep.mubr.f32.mxu0 0.0
        %1992 = vmatmul.mubr.f32.gmra.mxu0 %v761
        %v1993 = vpop.f32.mrf.mxu0
        %v1994 = vadd.f32 0.0, %v1993
        %v1995 = vpop.f32.mrf.mxu0
        %1996 = vmatprep.mubr.f32.mxu0 0.0
        %1997 = vmatmul.mubr.f32.gmra.mxu0 %v727
        %v1998 = vpop.f32.mrf.mxu0
        %v1999 = vadd.f32 0.0, %v1998
        %v2000 = vpop.f32.mrf.mxu0
        %2001 = vmatprep.mubr.f32.mxu0 0.0
        %2002 = vmatmul.mubr.f32.gmra.mxu0 %v762
        %v2003 = vpop.f32.mrf.mxu0
        %v2004 = vadd.f32 0.0, %v2003
        %v2005 = vpop.f32.mrf.mxu0
        %2006 = vmatprep.mubr.f32.mxu0 0.0
        %2007 = vmatmul.mubr.f32.gmra.mxu0 %v730
        %v2008 = vpop.f32.mrf.mxu0
        %v2009 = vadd.f32 0.0, %v2008
        %v2010 = vpop.f32.mrf.mxu0
        %2011 = vmatprep.mubr.f32.mxu0 0.0
        %2012 = vmatmul.mubr.f32.gmra.mxu0 %v763
        %v2013 = vpop.f32.mrf.mxu0
        %v2014 = vadd.f32 0.0, %v2013
        %v2015 = vpop.f32.mrf.mxu0
        %2016 = vmatprep.mubr.f32.mxu0 0.0
        %2017 = vmatmul.mubr.f32.gmra.mxu0 %v733
        %v2018 = vpop.f32.mrf.mxu0
        %v2019 = vadd.f32 0.0, %v2018
        %v2020 = vpop.f32.mrf.mxu0
        %2021 = vdwg.mxu0
        %v2022 = vadd.f32 %v1844, %v1944
        %v2023 = vadd.f32 %v1845, %v1949
        %v2024 = vadd.f32 %v1846, %v1954
        %v2025 = vadd.f32 %v1847, %v1959
        %v2026 = vadd.f32 %v1848, %v1964
        %v2027 = vadd.f32 %v1849, %v1969
        %v2028 = vadd.f32 %v1850, %v1974
        %v2029 = vadd.f32 %v1851, %v1979
        %v2030 = vadd.f32 %v1852, %v1984
        %v2031 = vadd.f32 %v1853, %v1989
        %v2032 = vadd.f32 %v1854, %v1994
        %v2033 = vadd.f32 %v1855, %v1999
        %v2034 = vadd.f32 %v1856, %v2004
        %v2035 = vadd.f32 %v1857, %v2009
        %v2036 = vadd.f32 %v1858, %v2014
        %v2037 = vadd.f32 %v1859, %v2019
        %s2038 = scalar_lea.vmem [#allocation10], 896
        %v2039 = vld [vmem:[%s2038] sm:$0xff]
        %v2040 = vld [vmem:[%s2038 + $0x8] sm:$0xff]
        %v2041 = vld [vmem:[%s2038 + $0x10] sm:$0xff]
        %v2042 = vld [vmem:[%s2038 + $0x18] sm:$0xff]
        %v2043 = vld [vmem:[%s2038 + $0x20] sm:$0xff]
        %v2044 = vld [vmem:[%s2038 + $0x28] sm:$0xff]
        %v2045 = vld [vmem:[%s2038 + $0x30] sm:$0xff]
        %v2046 = vld [vmem:[%s2038 + $0x38] sm:$0xff]
        %v2047 = vld [vmem:[%s2038 + $0x40] sm:$0xff]
        %v2048 = vld [vmem:[%s2038 + $0x48] sm:$0xff]
        %v2049 = vld [vmem:[%s2038 + $0x50] sm:$0xff]
        %v2050 = vld [vmem:[%s2038 + $0x58] sm:$0xff]
        %v2051 = vld [vmem:[%s2038 + $0x60] sm:$0xff]
        %v2052 = vld [vmem:[%s2038 + $0x68] sm:$0xff]
        %v2053 = vld [vmem:[%s2038 + $0x70] sm:$0xff]
        %v2054 = vld [vmem:[%s2038 + $0x78] sm:$0xff]
        %2055 = vmatprep.subr.mxu0 0.0
        %2056 = vmatpush1.msra.mxu0 %v2054
        %2057 = vmatprep.subr.mxu0 0.0
        %2058 = vmatpush1.msra.mxu0 %v2053
        %2059 = vmatprep.subr.mxu0 0.0
        %2060 = vmatpush1.msra.mxu0 %v2052
        %2061 = vmatprep.subr.mxu0 0.0
        %2062 = vmatpush1.msra.mxu0 %v2051
        %2063 = vmatprep.subr.mxu0 0.0
        %2064 = vmatpush1.msra.mxu0 %v2050
        %2065 = vmatprep.subr.mxu0 0.0
        %2066 = vmatpush1.msra.mxu0 %v2049
        %2067 = vmatprep.subr.mxu0 0.0
        %2068 = vmatpush1.msra.mxu0 %v2048
        %2069 = vmatprep.subr.mxu0 0.0
        %2070 = vmatpush1.msra.mxu0 %v2047
        %2071 = vmatprep.subr.mxu0 0.0
        %2072 = vmatpush1.msra.mxu0 %v2046
        %2073 = vmatprep.subr.mxu0 0.0
        %2074 = vmatpush1.msra.mxu0 %v2045
        %2075 = vmatprep.subr.mxu0 0.0
        %2076 = vmatpush1.msra.mxu0 %v2044
        %2077 = vmatprep.subr.mxu0 0.0
        %2078 = vmatpush1.msra.mxu0 %v2043
        %2079 = vmatprep.subr.mxu0 0.0
        %2080 = vmatpush1.msra.mxu0 %v2042
        %2081 = vmatprep.subr.mxu0 0.0
        %2082 = vmatpush1.msra.mxu0 %v2041
        %2083 = vmatprep.subr.mxu0 0.0
        %2084 = vmatpush1.msra.mxu0 %v2040
        %2085 = vmatprep.subr.mxu0 0.0
        %2086 = vmatpush1.msra.mxu0 %v2039
        %2087 = vmatprep.subr.mxu0 0.0
        %2088 = vmatpush2.msra.mxu0 0.0
        %2089 = vmatprep.subr.mxu0 0.0
        %2090 = vmatpush2.msra.mxu0 0.0
        %2091 = vmatprep.subr.mxu0 0.0
        %2092 = vmatpush2.msra.mxu0 0.0
        %2093 = vmatprep.subr.mxu0 0.0
        %2094 = vmatpush2.msra.mxu0 0.0
        %2095 = vmatprep.subr.mxu0 0.0
        %2096 = vmatpush2.msra.mxu0 0.0
        %2097 = vmatprep.subr.mxu0 0.0
        %2098 = vmatpush2.msra.mxu0 0.0
        %2099 = vmatprep.subr.mxu0 0.0
        %2100 = vmatpush2.msra.mxu0 0.0
        %2101 = vmatprep.subr.mxu0 0.0
        %2102 = vmatpush2.msra.mxu0 0.0
        %2103 = vmatprep.subr.mxu0 0.0
        %2104 = vmatpush2.msra.mxu0 0.0
        %2105 = vmatprep.subr.mxu0 0.0
        %2106 = vmatpush2.msra.mxu0 0.0
        %2107 = vmatprep.subr.mxu0 0.0
        %2108 = vmatpush2.msra.mxu0 0.0
        %2109 = vmatprep.subr.mxu0 0.0
        %2110 = vmatpush2.msra.mxu0 0.0
        %2111 = vmatprep.subr.mxu0 0.0
        %2112 = vmatpush2.msra.mxu0 0.0
        %2113 = vmatprep.subr.mxu0 0.0
        %2114 = vmatpush2.msra.mxu0 0.0
        %2115 = vmatprep.subr.mxu0 0.0
        %2116 = vmatpush2.msra.mxu0 0.0
        %2117 = vmatprep.subr.mxu0 0.0
        %2118 = vmatpush2.msra.mxu0 0.0
        %2119 = vmatprep.mubr.f32.mxu0 0.0
        %2120 = vmatmul.mubr.f32.gmra.mxu0 %v667
        %v2121 = vpop.f32.mrf.mxu0
        %v2122 = vadd.f32 0.0, %v2121
        %v2123 = vpop.f32.mrf.mxu0
        %2124 = vmatprep.mubr.f32.mxu0 0.0
        %2125 = vmatmul.mubr.f32.gmra.mxu0 %v668
        %v2126 = vpop.f32.mrf.mxu0
        %v2127 = vadd.f32 0.0, %v2126
        %v2128 = vpop.f32.mrf.mxu0
        %2129 = vmatprep.mubr.f32.mxu0 0.0
        %2130 = vmatmul.mubr.f32.gmra.mxu0 %v669
        %v2131 = vpop.f32.mrf.mxu0
        %v2132 = vadd.f32 0.0, %v2131
        %v2133 = vpop.f32.mrf.mxu0
        %2134 = vmatprep.mubr.f32.mxu0 0.0
        %2135 = vmatmul.mubr.f32.gmra.mxu0 %v670
        %v2136 = vpop.f32.mrf.mxu0
        %v2137 = vadd.f32 0.0, %v2136
        %v2138 = vpop.f32.mrf.mxu0
        %2139 = vmatprep.mubr.f32.mxu0 0.0
        %2140 = vmatmul.mubr.f32.gmra.mxu0 %v671
        %v2141 = vpop.f32.mrf.mxu0
        %v2142 = vadd.f32 0.0, %v2141
        %v2143 = vpop.f32.mrf.mxu0
        %2144 = vmatprep.mubr.f32.mxu0 0.0
        %2145 = vmatmul.mubr.f32.gmra.mxu0 %v672
        %v2146 = vpop.f32.mrf.mxu0
        %v2147 = vadd.f32 0.0, %v2146
        %v2148 = vpop.f32.mrf.mxu0
        %2149 = vmatprep.mubr.f32.mxu0 0.0
        %2150 = vmatmul.mubr.f32.gmra.mxu0 %v673
        %v2151 = vpop.f32.mrf.mxu0
        %v2152 = vadd.f32 0.0, %v2151
        %v2153 = vpop.f32.mrf.mxu0
        %2154 = vmatprep.mubr.f32.mxu0 0.0
        %2155 = vmatmul.mubr.f32.gmra.mxu0 %v674
        %v2156 = vpop.f32.mrf.mxu0
        %v2157 = vadd.f32 0.0, %v2156
        %v2158 = vpop.f32.mrf.mxu0
        %2159 = vmatprep.mubr.f32.mxu0 0.0
        %2160 = vmatmul.mubr.f32.gmra.mxu0 %v675
        %v2161 = vpop.f32.mrf.mxu0
        %v2162 = vadd.f32 0.0, %v2161
        %v2163 = vpop.f32.mrf.mxu0
        %2164 = vmatprep.mubr.f32.mxu0 0.0
        %2165 = vmatmul.mubr.f32.gmra.mxu0 %v676
        %v2166 = vpop.f32.mrf.mxu0
        %v2167 = vadd.f32 0.0, %v2166
        %v2168 = vpop.f32.mrf.mxu0
        %2169 = vmatprep.mubr.f32.mxu0 0.0
        %2170 = vmatmul.mubr.f32.gmra.mxu0 %v677
        %v2171 = vpop.f32.mrf.mxu0
        %v2172 = vadd.f32 0.0, %v2171
        %v2173 = vpop.f32.mrf.mxu0
        %2174 = vmatprep.mubr.f32.mxu0 0.0
        %2175 = vmatmul.mubr.f32.gmra.mxu0 %v678
        %v2176 = vpop.f32.mrf.mxu0
        %v2177 = vadd.f32 0.0, %v2176
        %v2178 = vpop.f32.mrf.mxu0
        %2179 = vmatprep.mubr.f32.mxu0 0.0
        %2180 = vmatmul.mubr.f32.gmra.mxu0 %v679
        %v2181 = vpop.f32.mrf.mxu0
        %v2182 = vadd.f32 0.0, %v2181
        %v2183 = vpop.f32.mrf.mxu0
        %2184 = vmatprep.mubr.f32.mxu0 0.0
        %2185 = vmatmul.mubr.f32.gmra.mxu0 %v680
        %v2186 = vpop.f32.mrf.mxu0
        %v2187 = vadd.f32 0.0, %v2186
        %v2188 = vpop.f32.mrf.mxu0
        %2189 = vmatprep.mubr.f32.mxu0 0.0
        %2190 = vmatmul.mubr.f32.gmra.mxu0 %v681
        %v2191 = vpop.f32.mrf.mxu0
        %v2192 = vadd.f32 0.0, %v2191
        %v2193 = vpop.f32.mrf.mxu0
        %2194 = vmatprep.mubr.f32.mxu0 0.0
        %2195 = vmatmul.mubr.f32.gmra.mxu0 %v682
        %v2196 = vpop.f32.mrf.mxu0
        %v2197 = vadd.f32 0.0, %v2196
        %v2198 = vpop.f32.mrf.mxu0
        %2199 = vdwg.mxu0
        %v2200 = vadd.f32 %v2022, %v2122
        %v2201 = vadd.f32 %v2023, %v2127
        %v2202 = vadd.f32 %v2024, %v2132
        %v2203 = vadd.f32 %v2025, %v2137
        %v2204 = vadd.f32 %v2026, %v2142
        %v2205 = vadd.f32 %v2027, %v2147
        %v2206 = vadd.f32 %v2028, %v2152
        %v2207 = vadd.f32 %v2029, %v2157
        %v2208 = vadd.f32 %v2030, %v2162
        %v2209 = vadd.f32 %v2031, %v2167
        %v2210 = vadd.f32 %v2032, %v2172
        %v2211 = vadd.f32 %v2033, %v2177
        %v2212 = vadd.f32 %v2034, %v2182
        %v2213 = vadd.f32 %v2035, %v2187
        %v2214 = vadd.f32 %v2036, %v2192
        %v2215 = vadd.f32 %v2037, %v2197
        %s2216 = scalar_lea.vmem [#allocation10], 1024
        %v2217 = vld [vmem:[%s2216] sm:$0xff]
        %v2218 = vld [vmem:[%s2216 + $0x8] sm:$0xff]
        %v2219 = vld [vmem:[%s2216 + $0x10] sm:$0xff]
        %v2220 = vld [vmem:[%s2216 + $0x18] sm:$0xff]
        %v2221 = vld [vmem:[%s2216 + $0x20] sm:$0xff]
        %v2222 = vld [vmem:[%s2216 + $0x28] sm:$0xff]
        %v2223 = vld [vmem:[%s2216 + $0x30] sm:$0xff]
        %v2224 = vld [vmem:[%s2216 + $0x38] sm:$0xff]
        %v2225 = vld [vmem:[%s2216 + $0x40] sm:$0xff]
        %v2226 = vld [vmem:[%s2216 + $0x48] sm:$0xff]
        %v2227 = vld [vmem:[%s2216 + $0x50] sm:$0xff]
        %v2228 = vld [vmem:[%s2216 + $0x58] sm:$0xff]
        %v2229 = vld [vmem:[%s2216 + $0x60] sm:$0xff]
        %v2230 = vld [vmem:[%s2216 + $0x68] sm:$0xff]
        %v2231 = vld [vmem:[%s2216 + $0x70] sm:$0xff]
        %v2232 = vld [vmem:[%s2216 + $0x78] sm:$0xff]
        %2233 = vmatprep.subr.mxu0 0.0
        %2234 = vmatpush1.msra.mxu0 %v2232
        %2235 = vmatprep.subr.mxu0 0.0
        %2236 = vmatpush1.msra.mxu0 %v2231
        %2237 = vmatprep.subr.mxu0 0.0
        %2238 = vmatpush1.msra.mxu0 %v2230
        %2239 = vmatprep.subr.mxu0 0.0
        %2240 = vmatpush1.msra.mxu0 %v2229
        %2241 = vmatprep.subr.mxu0 0.0
        %2242 = vmatpush1.msra.mxu0 %v2228
        %2243 = vmatprep.subr.mxu0 0.0
        %2244 = vmatpush1.msra.mxu0 %v2227
        %2245 = vmatprep.subr.mxu0 0.0
        %2246 = vmatpush1.msra.mxu0 %v2226
        %2247 = vmatprep.subr.mxu0 0.0
        %2248 = vmatpush1.msra.mxu0 %v2225
        %2249 = vmatprep.subr.mxu0 0.0
        %2250 = vmatpush1.msra.mxu0 %v2224
        %2251 = vmatprep.subr.mxu0 0.0
        %2252 = vmatpush1.msra.mxu0 %v2223
        %2253 = vmatprep.subr.mxu0 0.0
        %2254 = vmatpush1.msra.mxu0 %v2222
        %2255 = vmatprep.subr.mxu0 0.0
        %2256 = vmatpush1.msra.mxu0 %v2221
        %2257 = vmatprep.subr.mxu0 0.0
        %2258 = vmatpush1.msra.mxu0 %v2220
        %2259 = vmatprep.subr.mxu0 0.0
        %2260 = vmatpush1.msra.mxu0 %v2219
        %2261 = vmatprep.subr.mxu0 0.0
        %2262 = vmatpush1.msra.mxu0 %v2218
        %2263 = vmatprep.subr.mxu0 0.0
        %2264 = vmatpush1.msra.mxu0 %v2217
        %2265 = vmatprep.subr.mxu0 0.0
        %2266 = vmatpush2.msra.mxu0 0.0
        %2267 = vmatprep.subr.mxu0 0.0
        %2268 = vmatpush2.msra.mxu0 0.0
        %2269 = vmatprep.subr.mxu0 0.0
        %2270 = vmatpush2.msra.mxu0 0.0
        %2271 = vmatprep.subr.mxu0 0.0
        %2272 = vmatpush2.msra.mxu0 0.0
        %2273 = vmatprep.subr.mxu0 0.0
        %2274 = vmatpush2.msra.mxu0 0.0
        %2275 = vmatprep.subr.mxu0 0.0
        %2276 = vmatpush2.msra.mxu0 0.0
        %2277 = vmatprep.subr.mxu0 0.0
        %2278 = vmatpush2.msra.mxu0 0.0
        %2279 = vmatprep.subr.mxu0 0.0
        %2280 = vmatpush2.msra.mxu0 0.0
        %2281 = vmatprep.subr.mxu0 0.0
        %2282 = vmatpush2.msra.mxu0 0.0
        %2283 = vmatprep.subr.mxu0 0.0
        %2284 = vmatpush2.msra.mxu0 0.0
        %2285 = vmatprep.subr.mxu0 0.0
        %2286 = vmatpush2.msra.mxu0 0.0
        %2287 = vmatprep.subr.mxu0 0.0
        %2288 = vmatpush2.msra.mxu0 0.0
        %2289 = vmatprep.subr.mxu0 0.0
        %2290 = vmatpush2.msra.mxu0 0.0
        %2291 = vmatprep.subr.mxu0 0.0
        %2292 = vmatpush2.msra.mxu0 0.0
        %2293 = vmatprep.subr.mxu0 0.0
        %2294 = vmatpush2.msra.mxu0 0.0
        %2295 = vmatprep.subr.mxu0 0.0
        %2296 = vmatpush2.msra.mxu0 0.0
        %2297 = vmatprep.mubr.f32.mxu0 0.0
        %2298 = vmatmul.mubr.f32.gmra.mxu0 %v773
        %v2299 = vpop.f32.mrf.mxu0
        %v2300 = vadd.f32 0.0, %v2299
        %v2301 = vpop.f32.mrf.mxu0
        %2302 = vmatprep.mubr.f32.mxu0 0.0
        %2303 = vmatmul.mubr.f32.gmra.mxu0 %v817
        %v2304 = vpop.f32.mrf.mxu0
        %v2305 = vadd.f32 0.0, %v2304
        %v2306 = vpop.f32.mrf.mxu0
        %2307 = vmatprep.mubr.f32.mxu0 0.0
        %2308 = vmatmul.mubr.f32.gmra.mxu0 %v776
        %v2309 = vpop.f32.mrf.mxu0
        %v2310 = vadd.f32 0.0, %v2309
        %v2311 = vpop.f32.mrf.mxu0
        %2312 = vmatprep.mubr.f32.mxu0 0.0
        %2313 = vmatmul.mubr.f32.gmra.mxu0 %v818
        %v2314 = vpop.f32.mrf.mxu0
        %v2315 = vadd.f32 0.0, %v2314
        %v2316 = vpop.f32.mrf.mxu0
        %2317 = vmatprep.mubr.f32.mxu0 0.0
        %2318 = vmatmul.mubr.f32.gmra.mxu0 %v779
        %v2319 = vpop.f32.mrf.mxu0
        %v2320 = vadd.f32 0.0, %v2319
        %v2321 = vpop.f32.mrf.mxu0
        %2322 = vmatprep.mubr.f32.mxu0 0.0
        %2323 = vmatmul.mubr.f32.gmra.mxu0 %v819
        %v2324 = vpop.f32.mrf.mxu0
        %v2325 = vadd.f32 0.0, %v2324
        %v2326 = vpop.f32.mrf.mxu0
        %2327 = vmatprep.mubr.f32.mxu0 0.0
        %2328 = vmatmul.mubr.f32.gmra.mxu0 %v782
        %v2329 = vpop.f32.mrf.mxu0
        %v2330 = vadd.f32 0.0, %v2329
        %v2331 = vpop.f32.mrf.mxu0
        %2332 = vmatprep.mubr.f32.mxu0 0.0
        %2333 = vmatmul.mubr.f32.gmra.mxu0 %v820
        %v2334 = vpop.f32.mrf.mxu0
        %v2335 = vadd.f32 0.0, %v2334
        %v2336 = vpop.f32.mrf.mxu0
        %2337 = vmatprep.mubr.f32.mxu0 0.0
        %2338 = vmatmul.mubr.f32.gmra.mxu0 %v785
        %v2339 = vpop.f32.mrf.mxu0
        %v2340 = vadd.f32 0.0, %v2339
        %v2341 = vpop.f32.mrf.mxu0
        %2342 = vmatprep.mubr.f32.mxu0 0.0
        %2343 = vmatmul.mubr.f32.gmra.mxu0 %v821
        %v2344 = vpop.f32.mrf.mxu0
        %v2345 = vadd.f32 0.0, %v2344
        %v2346 = vpop.f32.mrf.mxu0
        %2347 = vmatprep.mubr.f32.mxu0 0.0
        %2348 = vmatmul.mubr.f32.gmra.mxu0 %v788
        %v2349 = vpop.f32.mrf.mxu0
        %v2350 = vadd.f32 0.0, %v2349
        %v2351 = vpop.f32.mrf.mxu0
        %2352 = vmatprep.mubr.f32.mxu0 0.0
        %2353 = vmatmul.mubr.f32.gmra.mxu0 %v822
        %v2354 = vpop.f32.mrf.mxu0
        %v2355 = vadd.f32 0.0, %v2354
        %v2356 = vpop.f32.mrf.mxu0
        %2357 = vmatprep.mubr.f32.mxu0 0.0
        %2358 = vmatmul.mubr.f32.gmra.mxu0 %v791
        %v2359 = vpop.f32.mrf.mxu0
        %v2360 = vadd.f32 0.0, %v2359
        %v2361 = vpop.f32.mrf.mxu0
        %2362 = vmatprep.mubr.f32.mxu0 0.0
        %2363 = vmatmul.mubr.f32.gmra.mxu0 %v823
        %v2364 = vpop.f32.mrf.mxu0
        %v2365 = vadd.f32 0.0, %v2364
        %v2366 = vpop.f32.mrf.mxu0
        %2367 = vmatprep.mubr.f32.mxu0 0.0
        %2368 = vmatmul.mubr.f32.gmra.mxu0 %v794
        %v2369 = vpop.f32.mrf.mxu0
        %v2370 = vadd.f32 0.0, %v2369
        %v2371 = vpop.f32.mrf.mxu0
        %2372 = vmatprep.mubr.f32.mxu0 0.0
        %2373 = vmatmul.mubr.f32.gmra.mxu0 %v824
        %v2374 = vpop.f32.mrf.mxu0
        %v2375 = vadd.f32 0.0, %v2374
        %v2376 = vpop.f32.mrf.mxu0
        %2377 = vdwg.mxu0
        %v2378 = vadd.f32 %v2200, %v2300
        %v2379 = vadd.f32 %v2201, %v2305
        %v2380 = vadd.f32 %v2202, %v2310
        %v2381 = vadd.f32 %v2203, %v2315
        %v2382 = vadd.f32 %v2204, %v2320
        %v2383 = vadd.f32 %v2205, %v2325
        %v2384 = vadd.f32 %v2206, %v2330
        %v2385 = vadd.f32 %v2207, %v2335
        %v2386 = vadd.f32 %v2208, %v2340
        %v2387 = vadd.f32 %v2209, %v2345
        %v2388 = vadd.f32 %v2210, %v2350
        %v2389 = vadd.f32 %v2211, %v2355
        %v2390 = vadd.f32 %v2212, %v2360
        %v2391 = vadd.f32 %v2213, %v2365
        %v2392 = vadd.f32 %v2214, %v2370
        %v2393 = vadd.f32 %v2215, %v2375
        %v2394 = vmax.f32 %v2378, 0.0
        %v2395 = vmax.f32 %v2379, 0.0
        %v2396 = vmax.f32 %v2380, 0.0
        %v2397 = vmax.f32 %v2381, 0.0
        %v2398 = vmax.f32 %v2382, 0.0
        %v2399 = vmax.f32 %v2383, 0.0
        %v2400 = vmax.f32 %v2384, 0.0
        %v2401 = vmax.f32 %v2385, 0.0
        %v2402 = vmax.f32 %v2386, 0.0
        %v2403 = vmax.f32 %v2387, 0.0
        %v2404 = vmax.f32 %v2388, 0.0
        %v2405 = vmax.f32 %v2389, 0.0
        %v2406 = vmax.f32 %v2390, 0.0
        %v2407 = vmax.f32 %v2391, 0.0
        %v2408 = vmax.f32 %v2392, 0.0
        %v2409 = vmax.f32 %v2393, 0.0
        %v2410 = vld [vmem:[#allocation11] sm:$0xff]
        %v2411 = vld [vmem:[#allocation11 + $0x8] sm:$0xff]
        %v2412 = vld [vmem:[#allocation11 + $0x10] sm:$0xff]
        %v2413 = vld [vmem:[#allocation11 + $0x18] sm:$0xff]
        %v2414 = vld [vmem:[#allocation11 + $0x20] sm:$0xff]
        %v2415 = vld [vmem:[#allocation11 + $0x28] sm:$0xff]
        %v2416 = vld [vmem:[#allocation11 + $0x30] sm:$0xff]
        %v2417 = vld [vmem:[#allocation11 + $0x38] sm:$0xff]
        %v2418 = vld [vmem:[#allocation11 + $0x40] sm:$0xff]
        %v2419 = vld [vmem:[#allocation11 + $0x48] sm:$0xff]
        %v2420 = vld [vmem:[#allocation11 + $0x50] sm:$0xff]
        %v2421 = vld [vmem:[#allocation11 + $0x58] sm:$0xff]
        %v2422 = vld [vmem:[#allocation11 + $0x60] sm:$0xff]
        %v2423 = vld [vmem:[#allocation11 + $0x68] sm:$0xff]
        %v2424 = vld [vmem:[#allocation11 + $0x70] sm:$0xff]
        %v2425 = vld [vmem:[#allocation11 + $0x78] sm:$0xff]
        %2426 = vmatprep.subr.mxu0 0.0
        %2427 = vmatpush1.msra.mxu0 %v2425
        %2428 = vmatprep.subr.mxu0 0.0
        %2429 = vmatpush1.msra.mxu0 %v2424
        %2430 = vmatprep.subr.mxu0 0.0
        %2431 = vmatpush1.msra.mxu0 %v2423
        %2432 = vmatprep.subr.mxu0 0.0
        %2433 = vmatpush1.msra.mxu0 %v2422
        %2434 = vmatprep.subr.mxu0 0.0
        %2435 = vmatpush1.msra.mxu0 %v2421
        %2436 = vmatprep.subr.mxu0 0.0
        %2437 = vmatpush1.msra.mxu0 %v2420
        %2438 = vmatprep.subr.mxu0 0.0
        %2439 = vmatpush1.msra.mxu0 %v2419
        %2440 = vmatprep.subr.mxu0 0.0
        %2441 = vmatpush1.msra.mxu0 %v2418
        %2442 = vmatprep.subr.mxu0 0.0
        %2443 = vmatpush1.msra.mxu0 %v2417
        %2444 = vmatprep.subr.mxu0 0.0
        %2445 = vmatpush1.msra.mxu0 %v2416
        %2446 = vmatprep.subr.mxu0 0.0
        %2447 = vmatpush1.msra.mxu0 %v2415
        %2448 = vmatprep.subr.mxu0 0.0
        %2449 = vmatpush1.msra.mxu0 %v2414
        %2450 = vmatprep.subr.mxu0 0.0
        %2451 = vmatpush1.msra.mxu0 %v2413
        %2452 = vmatprep.subr.mxu0 0.0
        %2453 = vmatpush1.msra.mxu0 %v2412
        %2454 = vmatprep.subr.mxu0 0.0
        %2455 = vmatpush1.msra.mxu0 %v2411
        %2456 = vmatprep.subr.mxu0 0.0
        %2457 = vmatpush1.msra.mxu0 %v2410
        %2458 = vmatprep.subr.mxu0 0.0
        %2459 = vmatpush2.msra.mxu0 0.0
        %2460 = vmatprep.subr.mxu0 0.0
        %2461 = vmatpush2.msra.mxu0 0.0
        %2462 = vmatprep.subr.mxu0 0.0
        %2463 = vmatpush2.msra.mxu0 0.0
        %2464 = vmatprep.subr.mxu0 0.0
        %2465 = vmatpush2.msra.mxu0 0.0
        %2466 = vmatprep.subr.mxu0 0.0
        %2467 = vmatpush2.msra.mxu0 0.0
        %2468 = vmatprep.subr.mxu0 0.0
        %2469 = vmatpush2.msra.mxu0 0.0
        %2470 = vmatprep.subr.mxu0 0.0
        %2471 = vmatpush2.msra.mxu0 0.0
        %2472 = vmatprep.subr.mxu0 0.0
        %2473 = vmatpush2.msra.mxu0 0.0
        %2474 = vmatprep.subr.mxu0 0.0
        %2475 = vmatpush2.msra.mxu0 0.0
        %2476 = vmatprep.subr.mxu0 0.0
        %2477 = vmatpush2.msra.mxu0 0.0
        %2478 = vmatprep.subr.mxu0 0.0
        %2479 = vmatpush2.msra.mxu0 0.0
        %2480 = vmatprep.subr.mxu0 0.0
        %2481 = vmatpush2.msra.mxu0 0.0
        %2482 = vmatprep.subr.mxu0 0.0
        %2483 = vmatpush2.msra.mxu0 0.0
        %2484 = vmatprep.subr.mxu0 0.0
        %2485 = vmatpush2.msra.mxu0 0.0
        %2486 = vmatprep.subr.mxu0 0.0
        %2487 = vmatpush2.msra.mxu0 0.0
        %2488 = vmatprep.subr.mxu0 0.0
        %2489 = vmatpush2.msra.mxu0 0.0
        %2490 = vmatprep.mubr.f32.mxu0 0.0
        %2491 = vmatmul.mubr.f32.gmra.mxu0 %v2394
        %v2492 = vpop.f32.mrf.mxu0
        %v2493 = vadd.f32 %v456, %v2492
        %v2494 = vpop.f32.mrf.mxu0
        %2495 = vmatprep.mubr.f32.mxu0 0.0
        %2496 = vmatmul.mubr.f32.gmra.mxu0 %v2395
        %v2497 = vpop.f32.mrf.mxu0
        %v2498 = vadd.f32 %v457, %v2497
        %v2499 = vpop.f32.mrf.mxu0
        %2500 = vmatprep.mubr.f32.mxu0 0.0
        %2501 = vmatmul.mubr.f32.gmra.mxu0 %v2396
        %v2502 = vpop.f32.mrf.mxu0
        %v2503 = vadd.f32 %v458, %v2502
        %v2504 = vpop.f32.mrf.mxu0
        %2505 = vmatprep.mubr.f32.mxu0 0.0
        %2506 = vmatmul.mubr.f32.gmra.mxu0 %v2397
        %v2507 = vpop.f32.mrf.mxu0
        %v2508 = vadd.f32 %v459, %v2507
        %v2509 = vpop.f32.mrf.mxu0
        %2510 = vmatprep.mubr.f32.mxu0 0.0
        %2511 = vmatmul.mubr.f32.gmra.mxu0 %v2398
        %v2512 = vpop.f32.mrf.mxu0
        %v2513 = vadd.f32 %v460, %v2512
        %v2514 = vpop.f32.mrf.mxu0
        %2515 = vmatprep.mubr.f32.mxu0 0.0
        %2516 = vmatmul.mubr.f32.gmra.mxu0 %v2399
        %v2517 = vpop.f32.mrf.mxu0
        %v2518 = vadd.f32 %v461, %v2517
        %v2519 = vpop.f32.mrf.mxu0
        %2520 = vmatprep.mubr.f32.mxu0 0.0
        %2521 = vmatmul.mubr.f32.gmra.mxu0 %v2400
        %v2522 = vpop.f32.mrf.mxu0
        %v2523 = vadd.f32 %v462, %v2522
        %v2524 = vpop.f32.mrf.mxu0
        %2525 = vmatprep.mubr.f32.mxu0 0.0
        %2526 = vmatmul.mubr.f32.gmra.mxu0 %v2401
        %v2527 = vpop.f32.mrf.mxu0
        %v2528 = vadd.f32 %v463, %v2527
        %v2529 = vpop.f32.mrf.mxu0
        %2530 = vmatprep.mubr.f32.mxu0 0.0
        %2531 = vmatmul.mubr.f32.gmra.mxu0 %v2402
        %v2532 = vpop.f32.mrf.mxu0
        %v2533 = vadd.f32 %v464, %v2532
        %v2534 = vpop.f32.mrf.mxu0
        %2535 = vmatprep.mubr.f32.mxu0 0.0
        %2536 = vmatmul.mubr.f32.gmra.mxu0 %v2403
        %v2537 = vpop.f32.mrf.mxu0
        %v2538 = vadd.f32 %v465, %v2537
        %v2539 = vpop.f32.mrf.mxu0
        %2540 = vmatprep.mubr.f32.mxu0 0.0
        %2541 = vmatmul.mubr.f32.gmra.mxu0 %v2404
        %v2542 = vpop.f32.mrf.mxu0
        %v2543 = vadd.f32 %v466, %v2542
        %v2544 = vpop.f32.mrf.mxu0
        %2545 = vmatprep.mubr.f32.mxu0 0.0
        %2546 = vmatmul.mubr.f32.gmra.mxu0 %v2405
        %v2547 = vpop.f32.mrf.mxu0
        %v2548 = vadd.f32 %v467, %v2547
        %v2549 = vpop.f32.mrf.mxu0
        %2550 = vmatprep.mubr.f32.mxu0 0.0
        %2551 = vmatmul.mubr.f32.gmra.mxu0 %v2406
        %v2552 = vpop.f32.mrf.mxu0
        %v2553 = vadd.f32 %v468, %v2552
        %v2554 = vpop.f32.mrf.mxu0
        %2555 = vmatprep.mubr.f32.mxu0 0.0
        %2556 = vmatmul.mubr.f32.gmra.mxu0 %v2407
        %v2557 = vpop.f32.mrf.mxu0
        %v2558 = vadd.f32 %v469, %v2557
        %v2559 = vpop.f32.mrf.mxu0
        %2560 = vmatprep.mubr.f32.mxu0 0.0
        %2561 = vmatmul.mubr.f32.gmra.mxu0 %v2408
        %v2562 = vpop.f32.mrf.mxu0
        %v2563 = vadd.f32 %v470, %v2562
        %v2564 = vpop.f32.mrf.mxu0
        %2565 = vmatprep.mubr.f32.mxu0 0.0
        %2566 = vmatmul.mubr.f32.gmra.mxu0 %v2409
        %v2567 = vpop.f32.mrf.mxu0
        %v2568 = vadd.f32 %v471, %v2567
        %v2569 = vpop.f32.mrf.mxu0
        %2570 = vdwg.mxu0
        %v2571 = vmax.f32 %v2493, 0.0
        %v2572 = vmax.f32 %v2498, 0.0
        %v2573 = vmax.f32 %v2503, 0.0
        %v2574 = vmax.f32 %v2508, 0.0
        %v2575 = vmax.f32 %v2513, 0.0
        %v2576 = vmax.f32 %v2518, 0.0
        %v2577 = vmax.f32 %v2523, 0.0
        %v2578 = vmax.f32 %v2528, 0.0
        %v2579 = vmax.f32 %v2533, 0.0
        %v2580 = vmax.f32 %v2538, 0.0
        %v2581 = vmax.f32 %v2543, 0.0
        %v2582 = vmax.f32 %v2548, 0.0
        %v2583 = vmax.f32 %v2553, 0.0
        %v2584 = vmax.f32 %v2558, 0.0
        %v2585 = vmax.f32 %v2563, 0.0
        %v2586 = vmax.f32 %v2568, 0.0
        %2587 = vst [vmem:[%s441] sm:$0xff] %v2571
        %2588 = vst [vmem:[%s441 + $0x8] sm:$0xff] %v2572
        %2589 = vst [vmem:[%s441 + $0x10] sm:$0xff] %v2573
        %2590 = vst [vmem:[%s441 + $0x18] sm:$0xff] %v2574
        %2591 = vst [vmem:[%s441 + $0x20] sm:$0xff] %v2575
        %2592 = vst [vmem:[%s441 + $0x28] sm:$0xff] %v2576
        %2593 = vst [vmem:[%s441 + $0x30] sm:$0xff] %v2577
        %2594 = vst [vmem:[%s441 + $0x38] sm:$0xff] %v2578
        %2595 = vst [vmem:[%s441 + $0x40] sm:$0xff] %v2579
        %2596 = vst [vmem:[%s441 + $0x48] sm:$0xff] %v2580
        %2597 = vst [vmem:[%s441 + $0x50] sm:$0xff] %v2581
        %2598 = vst [vmem:[%s441 + $0x58] sm:$0xff] %v2582
        %2599 = vst [vmem:[%s441 + $0x60] sm:$0xff] %v2583
        %2600 = vst [vmem:[%s441 + $0x68] sm:$0xff] %v2584
        %2601 = vst [vmem:[%s441 + $0x70] sm:$0xff] %v2585
        %2602 = vst [vmem:[%s441 + $0x78] sm:$0xff] %v2586
        %s2603 = sand.u32 %s213, 1
        %s2604 = scalar_lea.sflag [#allocation4], %s2603
        %s2605 = sand.u32 %s213, 1
        %s2606 = smul.addr %s2605, 128
        %s2607 = scalar_lea.vmem [#allocation13], %s2606
        // Predicated region
        $region69: #{tpu_custom_call.1} parent=43 // pred_check
          %p2608 = pneg %p223
        $region70: #{tpu_custom_call.1} parent=43 // pred_check_branch
          %2610 = sbr.rel (%p2608) target = $region72
        $region71: #{tpu_custom_call.1} parent=43 // pred_region
          %s2611 = smul.u32 8, %s33
          %s2613 = ssub.s32 2048, 2048
          %2614 = vsyncadd %s2604, %s2613
          %s2615 = smul.addr %s2611, 2
          %s2616 = smul.addr %s32, 32
          %s2617 = sadd.s32 %s2615, %s2616
          %s2618 = smul.addr %s2617, 128
          %s2619 = scalar_lea.hbm %s6, %s2618
          %s2620 = sshll.u32 %s2607, 4
          %s2621 = int_to_ptr.vmem [resolvable:$true] %s2620
          %2626 = dma.vmem_to_hbm [thread:$0]  %s2621, 2048, %s2619, %s2604, 128, 128, 8
        $region72: #{tpu_custom_call.1} parent=43 // pred_fallthru
          _
      $region44: #{tpu_custom_call.1} parent=5 // pred_fallthru
        _
      %p2627 = scmp.le.s32.totalorder 2, %s23
      // Predicated region
      $region73: #{tpu_custom_call.1} parent=5 // pred_check
        %p2628 = pneg %p2627
      $region74: #{tpu_custom_call.1} parent=5 // pred_check_branch
        %2630 = sbr.rel (%p2628) target = $region76
      $region75: #{tpu_custom_call.1} parent=5 // pred_region
        %s2631 = ssub.s32 %s23, 2
        // Predicated region
        $region77: #{tpu_custom_call.1} parent=75 // pred_check
          %p2632 = pneg %p229
        $region78: #{tpu_custom_call.1} parent=75 // pred_check_branch
          %2634 = sbr.rel (%p2632) target = $region80
        $region79: #{tpu_custom_call.1} parent=75 // pred_region
          %s2635 = sand.u32 %s214, 1
          %s2636 = scalar_lea.sflag [#allocation4], %s2635
          %s2637 = sand.u32 %s214, 1
          %s2638 = smul.addr %s2637, 128
          %s2639 = scalar_lea.vmem [#allocation13], %s2638
          %2640 = dma.done %s2636, 2048
        $region80: #{tpu_custom_call.1} parent=75 // pred_fallthru
          _
      $region76: #{tpu_custom_call.1} parent=5 // pred_fallthru
        _
    $region6: #{tpu_custom_call.1} parent=1 // loop_footer
      %s27 = sadd.s32 1, %s23
    $region7: #{tpu_custom_call.1} parent=1 // loop_footer_branch
      %22 = sbr.rel target = $region3
    $region8: #{tpu_custom_call.1} parent=1 // loop_exit
      _
    %2641 = vsyncpa [#allocation3], 1
    %s2642 = scalar_lea.sflag [#allocation3], 1
    %2643 = vsyncpa %s2642, 1
    %2644 = vsyncpa [#allocation6], 1
    %s2645 = scalar_lea.sflag [#allocation6], 1
    %2646 = vsyncpa %s2645, 1
    %2647 = vsyncpa [#allocation9], 1
    %2648 = vsyncpa [#allocation12], 1
    %2649 = vsyncpa [#allocation4], 1
    %s2650 = scalar_lea.sflag [#allocation4], 1
    %2651 = vsyncpa %s2650, 1

</llo_original>
